<compile_context>
chip_gen: v7x
topology: tpu7x:2x2x1
jax: 0.10.0
libtpu: 0.0.40
codegen_flags: <defaults>
</compile_context>

<pallas_src>
import functools

import jax
import jax.numpy as jnp
from jax import lax
from jax.experimental import pallas as pl
from jax.experimental.pallas import tpu as pltpu


# ---------------------------------------------------------------------------
# Kernel
# ---------------------------------------------------------------------------
def _layernorm(x, gamma, beta, eps=1e-5):
    mean = jnp.mean(x, axis=-1, keepdims=True)
    var = jnp.mean((x - mean) ** 2, axis=-1, keepdims=True)
    return (x - mean) * lax.rsqrt(var + eps) * gamma + beta


def enhanced_cell_kernel(
    x_ref,                       # [M, In]  f32 (cast to compute dtype in-kernel)
    w_in_ref, b_in_ref,          # [In, E] (cdt), [1, E] (f32)
    w_qkv_ref, b_qkv_ref,        # [E, 3E] (cdt), [1, 3E] (f32)  (scale folded into Q)
    wo_ref, bo_ref,              # [E, E] (cdt), [1, E] (f32)
    w1_ref, b1_ref,              # [E, 4E] (cdt), [1, 4E] (f32)
    w2_ref, b2_ref,              # [4E, E] (cdt), [1, E] (f32)
    g1_ref, be1_ref,             # [1, E] layernorm 1 (f32)
    g2_ref, be2_ref,             # [1, E] layernorm 2 (f32)
    o_ref,                       # [M, E_pad]   lane-dense output slab
    *,
    num_heads: int,
    seq_len: int,
    batch_tile: int,
    emb_dim: int,
    exact_softmax: bool,
):
    f32 = jnp.float32
    cdt = w_in_ref.dtype                      # matmul operand dtype (bf16 or f32)
    E, H, S = emb_dim, num_heads, seq_len
    Dh = E // H
    M = batch_tile * S
    G = H * batch_tile                        # fused (head, batch) axis

    # ---- input projection (in-kernel cast, f32 accumulate) ------------------
    x = x_ref[...].astype(cdt)                                        # [M, In]
    h0 = jnp.dot(x, w_in_ref[...], preferred_element_type=f32) + b_in_ref[...]

    # ---- fused QKV projection (one MXU pass; 1/sqrt(Dh) folded into Q) ------
    qkv = jnp.dot(h0.astype(cdt), w_qkv_ref[...],
                  preferred_element_type=f32) + b_qkv_ref[...]        # [M, 3E]

    # ---- heads + batch to a leading axis (single relayout per tensor) -------
    def split_heads(t):                       # [M, E] f32 -> [G, S, Dh] cdt
        t = pltpu.einshape("mhd->hmd", t.reshape(M, H, Dh))           # [H, M, Dh]
        # [H, M, Dh] and [H*Bt, S, Dh] share the same row-major layout.
        return t.reshape(G, S, Dh).astype(cdt)

    qh = split_heads(qkv[:, 0:E])
    kh = split_heads(qkv[:, E:2 * E])
    vh = split_heads(qkv[:, 2 * E:3 * E])

    # ---- batched attention: exact per-batch, no mask, linear in batch_tile --
    s = jnp.einsum("gqd,gkd->gqk", qh, kh, preferred_element_type=f32)  # [G,S,S]
    s = s - jnp.max(s, axis=-1, keepdims=True)
    p = jnp.exp(s)
    denom = jnp.sum(p, axis=-1, keepdims=True)
    if exact_softmax:
        p = p / denom
    else:
        p = p * pl.reciprocal(denom, approx=True)   # EUP slot, ~free

    pv = jnp.einsum("gqk,gkd->gqd", p.astype(cdt), vh,
                    preferred_element_type=f32)                       # [G, S, Dh]

    # ---- merge heads back to [M, E], single full-depth out-projection -------
    pv = pltpu.einshape("hmd->mhd", pv.reshape(H, M, Dh)).reshape(M, E)
    attn = jnp.dot(pv.astype(cdt), wo_ref[...],
                   preferred_element_type=f32) + bo_ref[...]          # [M, E]

    # ---- residual + norm1 (f32 epilogue) ------------------------------------
    h1 = _layernorm(h0 + attn, g1_ref[...], be1_ref[...])

    # ---- feed-forward --------------------------------------------------------
    f = jnp.dot(h1.astype(cdt), w1_ref[...], preferred_element_type=f32) + b1_ref[...]
    f = jnp.maximum(f, 0.0)
    f = jnp.dot(f.astype(cdt), w2_ref[...], preferred_element_type=f32) + b2_ref[...]

    # ---- residual + norm2 -----------------------------------------------------
    y = _layernorm(h1 + f, g2_ref[...], be2_ref[...])                 # [M, E]

    # ---- output slab (lane-padded only when beneficial, see wrapper) --------
    e_pad = o_ref.shape[-1]
    if e_pad > E:
        y = jnp.concatenate([y, jnp.zeros((M, e_pad - E), y.dtype)], axis=-1)
    o_ref[...] = y.astype(o_ref.dtype)


# ---------------------------------------------------------------------------
# Weight packing (do once outside the per-call path when weights are static)
# ---------------------------------------------------------------------------
def pack_params(params, num_heads, compute_dtype=jnp.bfloat16):
    E = params["w_in"].shape[1]
    Dh = E // num_heads
    scale = 1.0 / (Dh ** 0.5)
    cdt, f32 = compute_dtype, jnp.float32
    return {
        "w_in": params["w_in"].astype(cdt), "b_in": params["b_in"].astype(f32),
        # PyTorch-style packed in_proj with the attention scale folded into Q.
        "w_qkv": jnp.concatenate(
            [params["wq"] * scale, params["wk"], params["wv"]], axis=1).astype(cdt),
        "b_qkv": jnp.concatenate(
            [params["bq"] * scale, params["bk"], params["bv"]], axis=1).astype(f32),
        "wo": params["wo"].astype(cdt), "bo": params["bo"].astype(f32),
        "w1": params["w1"].astype(cdt), "b1": params["b1"].astype(f32),
        "w2": params["w2"].astype(cdt), "b2": params["b2"].astype(f32),
        "g1": params["g1"].astype(f32), "be1": params["be1"].astype(f32),
        "g2": params["g2"].astype(f32), "be2": params["be2"].astype(f32),
    }


# ---------------------------------------------------------------------------
# Tiling / VMEM heuristics (per-generation)
# ---------------------------------------------------------------------------
def _auto_vmem_limit_bytes():
    try:
        info = pltpu.get_tpu_info()
        cap = int(getattr(info, "vmem_capacity_bytes", 64 * 1024 * 1024))
    except Exception:
        cap = 64 * 1024 * 1024
    if cap >= 100 * 1024 * 1024:          # v5e / v6e: 128 MiB physical
        return 96 * 1024 * 1024
    return 48 * 1024 * 1024               # v7x: 64 MiB per TensorCore


def _auto_batch_tile(B, S, target_rows=512):
    """Pick batches-per-grid-step: divisor of B, rows%8==0 when possible,
    >=2 grid steps when B>=2 (pipelining + v7x dual-TC), ~target_rows rows."""
    candidates = [d for d in range(1, B + 1) if B % d == 0]
    good = [d for d in candidates if (d * S) % 8 == 0 or d == B]
    if not good:
        good = [B]
    if B >= 2:
        multi = [d for d in good if d < B]
        if multi:
            good = multi
    fitting = [d for d in good if d * S <= target_rows]
    return max(fitting) if fitting else min(good)


# ---------------------------------------------------------------------------
# Wrapper
# ---------------------------------------------------------------------------
def enhanced_cell_embedding(
    x,
    params,
    num_heads,
    *,
    compute_dtype=jnp.bfloat16,     # MXU operand dtype (f32 accumulation)
    out_dtype=jnp.float32,
    batch_tile=None,                # batches per grid step; None -> auto
    pad_output_lanes=None,          # None -> auto (only when E%128!=0 and E>128)
    single_buffer_weights=True,     # pl.Buffered(1) on constant weight blocks
    exact_softmax=False,            # True -> exact softmax division
    vmem_limit_bytes=None,          # None -> per-generation default
):
    """x: [B, S, input_dim] -> [B, S, embedding_dim]."""
    B, S, In = x.shape

    # Accept raw or prepacked params.
    p = params if "w_qkv" in params else pack_params(params, num_heads, compute_dtype)

    E = p["w_in"].shape[1]
    Hf = p["w1"].shape[1]
    assert E % num_heads == 0, "embedding_dim must be divisible by num_heads"
    assert p["w_in"].shape == (In, E)
    assert p["w_qkv"].shape == (E, 3 * E) and p["wo"].shape == (E, E)
    assert p["w1"].shape == (E, Hf) and p["w2"].shape == (Hf, E)

    if batch_tile is None:
        batch_tile = _auto_batch_tile(B, S)
    assert B % batch_tile == 0
    n_tiles = B // batch_tile
    M = batch_tile * S

    if pad_output_lanes is None:
        pad_output_lanes = (E % 128 != 0) and (E > 128)
    E_pad = ((E + 127) // 128) * 128 if (pad_output_lanes and E % 128 != 0) else E

    if vmem_limit_bytes is None:
        vmem_limit_bytes = _auto_vmem_limit_bytes()

    # x stays f32; the bf16 cast happens inside the kernel (free VPU op).
    x2d = x.reshape(B * S, In)

    def wspec(shape):
        zeros = (0,) * len(shape)
        kwargs = {}
        if single_buffer_weights:
            # Constant block index across the grid -> single buffering halves
            # weight VMEM residency with no pipelining loss.
            kwargs["pipeline_mode"] = pl.Buffered(1)
        return pl.BlockSpec(shape, lambda *_: zeros, **kwargs)

    in_specs = [
        pl.BlockSpec((M, In), lambda i: (i, 0)),        # x slab
        wspec((In, E)), wspec((1, E)),                  # input_proj
        wspec((E, 3 * E)), wspec((1, 3 * E)),           # fused QKV
        wspec((E, E)), wspec((1, E)),                   # out_proj
        wspec((E, Hf)), wspec((1, Hf)),                 # ffn W1, b1
        wspec((Hf, E)), wspec((1, E)),                  # ffn W2, b2
        wspec((1, E)), wspec((1, E)),                   # norm1 gamma, beta
        wspec((1, E)), wspec((1, E)),                   # norm2 gamma, beta
    ]
    out_spec = pl.BlockSpec((M, E_pad), lambda i: (i, 0))

    kernel = functools.partial(
        enhanced_cell_kernel,
        num_heads=num_heads, seq_len=S, batch_tile=batch_tile, emb_dim=E,
        exact_softmax=exact_softmax)

    out2d = pl.pallas_call(
        kernel,
        out_shape=jax.ShapeDtypeStruct((B * S, E_pad), out_dtype),
        grid_spec=pltpu.PrefetchScalarGridSpec(
            num_scalar_prefetch=0,
            grid=(n_tiles,),
            in_specs=in_specs,
            out_specs=out_spec,
        ),
        compiler_params=pltpu.CompilerParams(
            dimension_semantics=("parallel",),
            vmem_limit_bytes=vmem_limit_bytes,
        ),
    )(
        x2d,
        p["w_in"], p["b_in"],
        p["w_qkv"], p["b_qkv"],
        p["wo"], p["bo"],
        p["w1"], p["b1"],
        p["w2"], p["b2"],
        p["g1"], p["be1"],
        p["g2"], p["be2"],
    )

    if E_pad > E:
        out2d = out2d[:, :E]
    return out2d.reshape(B, S, E)


# ---------------------------------------------------------------------------
# Pure-JAX reference (mirrors the PyTorch forward in eval mode, full f32)
# ---------------------------------------------------------------------------
def reference(x, p, num_heads):
    def ln(t, g, b, eps=1e-5):
        m = jnp.mean(t, -1, keepdims=True)
        v = jnp.mean((t - m) ** 2, -1, keepdims=True)
        return (t - m) * lax.rsqrt(v + eps) * g + b

    h0 = x @ p["w_in"] + p["b_in"]
    B, S, E = h0.shape
    Dh = E // num_heads
    q = (h0 @ p["wq"] + p["bq"]).reshape(B, S, num_heads, Dh).transpose(0, 2, 1, 3)
    k = (h0 @ p["wk"] + p["bk"]).reshape(B, S, num_heads, Dh).transpose(0, 2, 1, 3)
    v = (h0 @ p["wv"] + p["bv"]).reshape(B, S, num_heads, Dh).transpose(0, 2, 1, 3)
    s = jnp.einsum("bhqd,bhkd->bhqk", q, k) / (Dh ** 0.5)
    a = jax.nn.softmax(s, axis=-1)
    o = jnp.einsum("bhqk,bhkd->bhqd", a, v).transpose(0, 2, 1, 3).reshape(B, S, E)
    attn = o @ p["wo"] + p["bo"]
    h1 = ln(h0 + attn, p["g1"], p["be1"])
    f = jnp.maximum(h1 @ p["w1"] + p["b1"], 0.0) @ p["w2"] + p["b2"]
    return ln(h1 + f, p["g2"], p["be2"])


# ---------------------------------------------------------------------------
# Main
# ---------------------------------------------------------------------------
if __name__ == "__main__":
    B, S = 2, 8
    input_dim, embedding_dim, num_heads = 16, 32, 4
    hidden_dim = 4 * embedding_dim

    key = jax.random.PRNGKey(0)
    keys = jax.random.split(key, 16)

    def init(k, shape, scale=0.1):
        return (scale * jax.random.normal(k, shape)).astype(jnp.float32)

    # Weights stored as [in, out]; biases / LN params as [1, E] rows.
    params = {
        "w_in": init(keys[0], (input_dim, embedding_dim)),
        "b_in": init(keys[1], (1, embedding_dim)),
        "wq": init(keys[2], (embedding_dim, embedding_dim)),
        "wk": init(keys[3], (embedding_dim, embedding_dim)),
        "wv": init(keys[4], (embedding_dim, embedding_dim)),
        "bq": init(keys[5], (1, embedding_dim)),
        "bk": init(keys[6], (1, embedding_dim)),
        "bv": init(keys[7], (1, embedding_dim)),
        "wo": init(keys[8], (embedding_dim, embedding_dim)),
        "bo": init(keys[9], (1, embedding_dim)),
        "w1": init(keys[10], (embedding_dim, hidden_dim)),
        "b1": init(keys[11], (1, hidden_dim)),
        "w2": init(keys[12], (hidden_dim, embedding_dim)),
        "b2": init(keys[13], (1, embedding_dim)),
        "g1": jnp.ones((1, embedding_dim), jnp.float32),
        "be1": jnp.zeros((1, embedding_dim), jnp.float32),
        "g2": jnp.ones((1, embedding_dim), jnp.float32),
        "be2": jnp.zeros((1, embedding_dim), jnp.float32),
    }

    x = jax.random.normal(keys[14], (B, S, input_dim), jnp.float32)

    ref = reference(x, params, num_heads)

    # f32-operand path with exact softmax: tight check against the reference.
    out_f32 = enhanced_cell_embedding(
        x, params, num_heads, compute_dtype=jnp.float32, exact_softmax=True)
    out_f32 = jax.block_until_ready(out_f32)
    assert out_f32.shape == (B, S, embedding_dim)
    assert bool(jnp.all(jnp.isfinite(out_f32)))
    assert bool(jnp.allclose(out_f32, ref, atol=1e-2, rtol=1e-2))

    # Default path: bf16 MXU operands, approx EUP reciprocal in softmax.
    out_bf16 = enhanced_cell_embedding(x, params, num_heads)
    out_bf16 = jax.block_until_ready(out_bf16)
    assert out_bf16.shape == (B, S, embedding_dim)
    assert bool(jnp.all(jnp.isfinite(out_bf16)))
    assert bool(jnp.allclose(out_bf16, ref, atol=5e-2, rtol=5e-2))

    # Prepacked-weights path (weight packing done once, outside per-call path).
    packed = pack_params(params, num_heads, compute_dtype=jnp.bfloat16)
    out_packed = enhanced_cell_embedding(x, packed, num_heads)
    out_packed = jax.block_until_ready(out_packed)
    assert bool(jnp.allclose(out_packed, ref, atol=5e-2, rtol=5e-2))

    print("KERNEL_OK")
</pallas_src>

<mosaic_0001>
module attributes {stable_mosaic.version = 11 : i64} {
  func.func @enhanced_cell_kernel(%arg0: i32, %arg1: memref<8x16xf32, #tpu.memory_space<vmem>>, %arg2: memref<16x32xf32, #tpu.memory_space<vmem>>, %arg3: memref<1x32xf32, #tpu.memory_space<vmem>>, %arg4: memref<32x96xf32, #tpu.memory_space<vmem>>, %arg5: memref<1x96xf32, #tpu.memory_space<vmem>>, %arg6: memref<32x32xf32, #tpu.memory_space<vmem>>, %arg7: memref<1x32xf32, #tpu.memory_space<vmem>>, %arg8: memref<32x128xf32, #tpu.memory_space<vmem>>, %arg9: memref<1x128xf32, #tpu.memory_space<vmem>>, %arg10: memref<128x32xf32, #tpu.memory_space<vmem>>, %arg11: memref<1x32xf32, #tpu.memory_space<vmem>>, %arg12: memref<1x32xf32, #tpu.memory_space<vmem>>, %arg13: memref<1x32xf32, #tpu.memory_space<vmem>>, %arg14: memref<1x32xf32, #tpu.memory_space<vmem>>, %arg15: memref<1x32xf32, #tpu.memory_space<vmem>>, %arg16: memref<8x32xf32, #tpu.memory_space<vmem>>) attributes {dimension_semantics = [#tpu.dimension_semantics<parallel>], iteration_bounds = array<i64: 2>, scalar_prefetch = 0 : i64, scratch_operands = 0 : i64, tpu.core_type = #tpu.core_type<tc>, window_params = [{transform_indices = @transform_0, window_bounds = array<i64: 8, 16>}, {pipeline_mode = #tpu.pipeline_mode<synchronous>, transform_indices = @transform_1, window_bounds = array<i64: 16, 32>}, {pipeline_mode = #tpu.pipeline_mode<synchronous>, transform_indices = @transform_2, window_bounds = array<i64: 1, 32>}, {pipeline_mode = #tpu.pipeline_mode<synchronous>, transform_indices = @transform_3, window_bounds = array<i64: 32, 96>}, {pipeline_mode = #tpu.pipeline_mode<synchronous>, transform_indices = @transform_4, window_bounds = array<i64: 1, 96>}, {pipeline_mode = #tpu.pipeline_mode<synchronous>, transform_indices = @transform_5, window_bounds = array<i64: 32, 32>}, {pipeline_mode = #tpu.pipeline_mode<synchronous>, transform_indices = @transform_6, window_bounds = array<i64: 1, 32>}, {pipeline_mode = #tpu.pipeline_mode<synchronous>, transform_indices = @transform_7, window_bounds = array<i64: 32, 128>}, {pipeline_mode = #tpu.pipeline_mode<synchronous>, transform_indices = @transform_8, window_bounds = array<i64: 1, 128>}, {pipeline_mode = #tpu.pipeline_mode<synchronous>, transform_indices = @transform_9, window_bounds = array<i64: 128, 32>}, {pipeline_mode = #tpu.pipeline_mode<synchronous>, transform_indices = @transform_10, window_bounds = array<i64: 1, 32>}, {pipeline_mode = #tpu.pipeline_mode<synchronous>, transform_indices = @transform_11, window_bounds = array<i64: 1, 32>}, {pipeline_mode = #tpu.pipeline_mode<synchronous>, transform_indices = @transform_12, window_bounds = array<i64: 1, 32>}, {pipeline_mode = #tpu.pipeline_mode<synchronous>, transform_indices = @transform_13, window_bounds = array<i64: 1, 32>}, {pipeline_mode = #tpu.pipeline_mode<synchronous>, transform_indices = @transform_14, window_bounds = array<i64: 1, 32>}, {transform_indices = @transform_15, window_bounds = array<i64: 8, 32>}]} {
    %c0 = arith.constant 0 : index
    %c0_0 = arith.constant 0 : index
    %0 = vector.load %arg1[%c0, %c0_0] : memref<8x16xf32, #tpu.memory_space<vmem>>, vector<8x16xf32>
    %c0_1 = arith.constant 0 : index
    %c0_2 = arith.constant 0 : index
    %1 = vector.load %arg2[%c0_1, %c0_2] : memref<16x32xf32, #tpu.memory_space<vmem>>, vector<16x32xf32>
    %cst = arith.constant dense<0.000000e+00> : vector<8x32xf32>
    %2 = tpu.matmul %0, %1, %cst {dimension_numbers = #tpu.dot_dimension_numbers<[1], [0], [0], [1], [0, 0, 1, 1], [], []>} : vector<8x16xf32>, vector<16x32xf32>, vector<8x32xf32> -> vector<8x32xf32>
    %c0_3 = arith.constant 0 : index
    %c0_4 = arith.constant 0 : index
    %3 = vector.load %arg3[%c0_3, %c0_4] : memref<1x32xf32, #tpu.memory_space<vmem>>, vector<1x32xf32>
    %4 = vector.broadcast %3 : vector<1x32xf32> to vector<8x32xf32>
    %5 = arith.addf %2, %4 : vector<8x32xf32>
    %c0_5 = arith.constant 0 : index
    %c0_6 = arith.constant 0 : index
    %6 = vector.load %arg4[%c0_5, %c0_6] : memref<32x96xf32, #tpu.memory_space<vmem>>, vector<32x96xf32>
    %cst_7 = arith.constant dense<0.000000e+00> : vector<8x96xf32>
    %7 = tpu.matmul %5, %6, %cst_7 {dimension_numbers = #tpu.dot_dimension_numbers<[1], [0], [0], [1], [0, 0, 1, 1], [], []>} : vector<8x32xf32>, vector<32x96xf32>, vector<8x96xf32> -> vector<8x96xf32>
    %c0_8 = arith.constant 0 : index
    %c0_9 = arith.constant 0 : index
    %8 = vector.load %arg5[%c0_8, %c0_9] : memref<1x96xf32, #tpu.memory_space<vmem>>, vector<1x96xf32>
    %9 = vector.broadcast %8 : vector<1x96xf32> to vector<8x96xf32>
    %10 = arith.addf %7, %9 : vector<8x96xf32>
    %11 = vector.extract_strided_slice %10 {offsets = [0, 0], sizes = [8, 32], strides = [1, 1]} : vector<8x96xf32> to vector<8x32xf32>
    %12 = vector.shape_cast %11 : vector<8x32xf32> to vector<8x4x8xf32>
    %13 = tpu.transpose %12, [1, 0, 2] : vector<8x4x8xf32> -> vector<4x8x8xf32>
    %14 = vector.extract_strided_slice %10 {offsets = [0, 32], sizes = [8, 32], strides = [1, 1]} : vector<8x96xf32> to vector<8x32xf32>
    %15 = vector.shape_cast %14 : vector<8x32xf32> to vector<8x4x8xf32>
    %16 = tpu.transpose %15, [1, 0, 2] : vector<8x4x8xf32> -> vector<4x8x8xf32>
    %17 = vector.extract_strided_slice %10 {offsets = [0, 64], sizes = [8, 32], strides = [1, 1]} : vector<8x96xf32> to vector<8x32xf32>
    %18 = vector.shape_cast %17 : vector<8x32xf32> to vector<8x4x8xf32>
    %19 = tpu.transpose %18, [1, 0, 2] : vector<8x4x8xf32> -> vector<4x8x8xf32>
    "tpu.trace_start"() <{level = 10 : i32, message = "gqd,gkd->gqk"}> : () -> ()
    %cst_10 = arith.constant dense<0.000000e+00> : vector<4x8x8xf32>
    %20 = tpu.matmul %13, %16, %cst_10 {dimension_numbers = #tpu.dot_dimension_numbers<[2], [2], [1], [1], [0, 0, 0, 1, 1, 1], [0], [0]>} : vector<4x8x8xf32>, vector<4x8x8xf32>, vector<4x8x8xf32> -> vector<4x8x8xf32>
    "tpu.trace_stop"() : () -> ()
    %cst_11 = arith.constant dense<0xFF800000> : vector<4x8xf32>
    %21 = vector.multi_reduction <maximumf>, %20, %cst_11 [2] : vector<4x8x8xf32> to vector<4x8xf32>
    %22 = vector.shape_cast %21 : vector<4x8xf32> to vector<4x8x1xf32>
    %23 = vector.broadcast %22 : vector<4x8x1xf32> to vector<4x8x8xf32>
    %24 = arith.subf %20, %23 : vector<4x8x8xf32>
    %25 = math.exp %24 : vector<4x8x8xf32>
    %cst_12 = arith.constant dense<0.000000e+00> : vector<4x8xf32>
    %26 = vector.multi_reduction <add>, %25, %cst_12 [2] : vector<4x8x8xf32> to vector<4x8xf32>
    %27 = vector.shape_cast %26 : vector<4x8xf32> to vector<4x8x1xf32>
    %28 = vector.broadcast %27 : vector<4x8x1xf32> to vector<4x8x8xf32>
    %29 = arith.divf %25, %28 : vector<4x8x8xf32>
    "tpu.trace_start"() <{level = 10 : i32, message = "gqk,gkd->gqd"}> : () -> ()
    %cst_13 = arith.constant dense<0.000000e+00> : vector<4x8x8xf32>
    %30 = tpu.matmul %29, %19, %cst_13 {dimension_numbers = #tpu.dot_dimension_numbers<[2], [1], [1], [2], [0, 0, 0, 1, 1, 2], [0], [0]>} : vector<4x8x8xf32>, vector<4x8x8xf32>, vector<4x8x8xf32> -> vector<4x8x8xf32>
    "tpu.trace_stop"() : () -> ()
    %31 = tpu.transpose %30, [1, 0, 2] : vector<4x8x8xf32> -> vector<8x4x8xf32>
    %32 = vector.shape_cast %31 : vector<8x4x8xf32> to vector<8x32xf32>
    %c0_14 = arith.constant 0 : index
    %c0_15 = arith.constant 0 : index
    %33 = vector.load %arg6[%c0_14, %c0_15] : memref<32x32xf32, #tpu.memory_space<vmem>>, vector<32x32xf32>
    %cst_16 = arith.constant dense<0.000000e+00> : vector<8x32xf32>
    %34 = tpu.matmul %32, %33, %cst_16 {dimension_numbers = #tpu.dot_dimension_numbers<[1], [0], [0], [1], [0, 0, 1, 1], [], []>} : vector<8x32xf32>, vector<32x32xf32>, vector<8x32xf32> -> vector<8x32xf32>
    %c0_17 = arith.constant 0 : index
    %c0_18 = arith.constant 0 : index
    %35 = vector.load %arg7[%c0_17, %c0_18] : memref<1x32xf32, #tpu.memory_space<vmem>>, vector<1x32xf32>
    %36 = vector.broadcast %35 : vector<1x32xf32> to vector<8x32xf32>
    %37 = arith.addf %34, %36 : vector<8x32xf32>
    %38 = arith.addf %5, %37 : vector<8x32xf32>
    %c0_19 = arith.constant 0 : index
    %c0_20 = arith.constant 0 : index
    %39 = vector.load %arg12[%c0_19, %c0_20] : memref<1x32xf32, #tpu.memory_space<vmem>>, vector<1x32xf32>
    %c0_21 = arith.constant 0 : index
    %c0_22 = arith.constant 0 : index
    %40 = vector.load %arg13[%c0_21, %c0_22] : memref<1x32xf32, #tpu.memory_space<vmem>>, vector<1x32xf32>
    %cst_23 = arith.constant dense<0.000000e+00> : vector<8xf32>
    %41 = vector.multi_reduction <add>, %38, %cst_23 [1] : vector<8x32xf32> to vector<8xf32>
    %42 = vector.shape_cast %41 : vector<8xf32> to vector<8x1xf32>
    %cst_24 = arith.constant 3.200000e+01 : f32
    %43 = vector.broadcast %cst_24 : f32 to vector<8x1xf32>
    %44 = arith.divf %42, %43 : vector<8x1xf32>
    %45 = vector.broadcast %44 : vector<8x1xf32> to vector<8x32xf32>
    %46 = arith.subf %38, %45 : vector<8x32xf32>
    %47 = arith.mulf %46, %46 : vector<8x32xf32>
    %cst_25 = arith.constant dense<0.000000e+00> : vector<8xf32>
    %48 = vector.multi_reduction <add>, %47, %cst_25 [1] : vector<8x32xf32> to vector<8xf32>
    %49 = vector.shape_cast %48 : vector<8xf32> to vector<8x1xf32>
    %cst_26 = arith.constant 3.200000e+01 : f32
    %50 = vector.broadcast %cst_26 : f32 to vector<8x1xf32>
    %51 = arith.divf %49, %50 : vector<8x1xf32>
    %52 = vector.broadcast %44 : vector<8x1xf32> to vector<8x32xf32>
    %53 = arith.subf %38, %52 : vector<8x32xf32>
    %cst_27 = arith.constant 9.99999974E-6 : f32
    %54 = vector.broadcast %cst_27 : f32 to vector<8x1xf32>
    %55 = arith.addf %51, %54 : vector<8x1xf32>
    %56 = math.rsqrt %55 : vector<8x1xf32>
    %57 = vector.broadcast %56 : vector<8x1xf32> to vector<8x32xf32>
    %58 = arith.mulf %53, %57 : vector<8x32xf32>
    %59 = vector.broadcast %39 : vector<1x32xf32> to vector<8x32xf32>
    %60 = arith.mulf %58, %59 : vector<8x32xf32>
    %61 = vector.broadcast %40 : vector<1x32xf32> to vector<8x32xf32>
    %62 = arith.addf %60, %61 : vector<8x32xf32>
    %c0_28 = arith.constant 0 : index
    %c0_29 = arith.constant 0 : index
    %63 = vector.load %arg8[%c0_28, %c0_29] : memref<32x128xf32, #tpu.memory_space<vmem>>, vector<32x128xf32>
    %cst_30 = arith.constant dense<0.000000e+00> : vector<8x128xf32>
    %64 = tpu.matmul %62, %63, %cst_30 {dimension_numbers = #tpu.dot_dimension_numbers<[1], [0], [0], [1], [0, 0, 1, 1], [], []>} : vector<8x32xf32>, vector<32x128xf32>, vector<8x128xf32> -> vector<8x128xf32>
    %c0_31 = arith.constant 0 : index
    %c0_32 = arith.constant 0 : index
    %65 = vector.load %arg9[%c0_31, %c0_32] : memref<1x128xf32, #tpu.memory_space<vmem>>, vector<1x128xf32>
    %66 = vector.broadcast %65 : vector<1x128xf32> to vector<8x128xf32>
    %67 = arith.addf %64, %66 : vector<8x128xf32>
    %cst_33 = arith.constant 0.000000e+00 : f32
    %68 = vector.broadcast %cst_33 : f32 to vector<8x128xf32>
    %69 = arith.maximumf %67, %68 : vector<8x128xf32>
    %c0_34 = arith.constant 0 : index
    %c0_35 = arith.constant 0 : index
    %70 = vector.load %arg10[%c0_34, %c0_35] : memref<128x32xf32, #tpu.memory_space<vmem>>, vector<128x32xf32>
    %cst_36 = arith.constant dense<0.000000e+00> : vector<8x32xf32>
    %71 = tpu.matmul %69, %70, %cst_36 {dimension_numbers = #tpu.dot_dimension_numbers<[1], [0], [0], [1], [0, 0, 1, 1], [], []>} : vector<8x128xf32>, vector<128x32xf32>, vector<8x32xf32> -> vector<8x32xf32>
    %c0_37 = arith.constant 0 : index
    %c0_38 = arith.constant 0 : index
    %72 = vector.load %arg11[%c0_37, %c0_38] : memref<1x32xf32, #tpu.memory_space<vmem>>, vector<1x32xf32>
    %73 = vector.broadcast %72 : vector<1x32xf32> to vector<8x32xf32>
    %74 = arith.addf %71, %73 : vector<8x32xf32>
    %75 = arith.addf %62, %74 : vector<8x32xf32>
    %c0_39 = arith.constant 0 : index
    %c0_40 = arith.constant 0 : index
    %76 = vector.load %arg14[%c0_39, %c0_40] : memref<1x32xf32, #tpu.memory_space<vmem>>, vector<1x32xf32>
    %c0_41 = arith.constant 0 : index
    %c0_42 = arith.constant 0 : index
    %77 = vector.load %arg15[%c0_41, %c0_42] : memref<1x32xf32, #tpu.memory_space<vmem>>, vector<1x32xf32>
    %cst_43 = arith.constant dense<0.000000e+00> : vector<8xf32>
    %78 = vector.multi_reduction <add>, %75, %cst_43 [1] : vector<8x32xf32> to vector<8xf32>
    %79 = vector.shape_cast %78 : vector<8xf32> to vector<8x1xf32>
    %cst_44 = arith.constant 3.200000e+01 : f32
    %80 = vector.broadcast %cst_44 : f32 to vector<8x1xf32>
    %81 = arith.divf %79, %80 : vector<8x1xf32>
    %82 = vector.broadcast %81 : vector<8x1xf32> to vector<8x32xf32>
    %83 = arith.subf %75, %82 : vector<8x32xf32>
    %84 = arith.mulf %83, %83 : vector<8x32xf32>
    %cst_45 = arith.constant dense<0.000000e+00> : vector<8xf32>
    %85 = vector.multi_reduction <add>, %84, %cst_45 [1] : vector<8x32xf32> to vector<8xf32>
    %86 = vector.shape_cast %85 : vector<8xf32> to vector<8x1xf32>
    %cst_46 = arith.constant 3.200000e+01 : f32
    %87 = vector.broadcast %cst_46 : f32 to vector<8x1xf32>
    %88 = arith.divf %86, %87 : vector<8x1xf32>
    %89 = vector.broadcast %81 : vector<8x1xf32> to vector<8x32xf32>
    %90 = arith.subf %75, %89 : vector<8x32xf32>
    %cst_47 = arith.constant 9.99999974E-6 : f32
    %91 = vector.broadcast %cst_47 : f32 to vector<8x1xf32>
    %92 = arith.addf %88, %91 : vector<8x1xf32>
    %93 = math.rsqrt %92 : vector<8x1xf32>
    %94 = vector.broadcast %93 : vector<8x1xf32> to vector<8x32xf32>
    %95 = arith.mulf %90, %94 : vector<8x32xf32>
    %96 = vector.broadcast %76 : vector<1x32xf32> to vector<8x32xf32>
    %97 = arith.mulf %95, %96 : vector<8x32xf32>
    %98 = vector.broadcast %77 : vector<1x32xf32> to vector<8x32xf32>
    %99 = arith.addf %97, %98 : vector<8x32xf32>
    %c0_48 = arith.constant 0 : index
    %c0_49 = arith.constant 0 : index
    %100 = vector.load %arg16[%c0_48, %c0_49] : memref<8x32xf32, #tpu.memory_space<vmem>>, vector<8x32xf32>
    tpu.vector_store %arg16[%c0_48, %c0_49], %99 {strides = array<i32>} : memref<8x32xf32, #tpu.memory_space<vmem>>, vector<8x32xf32>,
    return
  }
  func.func @transform_0(%arg0: i32) -> (i32, i32) {
    %c0_i32 = arith.constant 0 : i32
    %c0_i32_0 = arith.constant 0 : i32
    return %arg0, %c0_i32 : i32, i32
  }
  func.func @transform_1(%arg0: i32) -> (i32, i32) {
    %c0_i32 = arith.constant 0 : i32
    %c0_i32_0 = arith.constant 0 : i32
    %c0_i32_1 = arith.constant 0 : i32
    return %c0_i32, %c0_i32_0 : i32, i32
  }
  func.func @transform_2(%arg0: i32) -> (i32, i32) {
    %c0_i32 = arith.constant 0 : i32
    %c0_i32_0 = arith.constant 0 : i32
    %c0_i32_1 = arith.constant 0 : i32
    return %c0_i32, %c0_i32_0 : i32, i32
  }
  func.func @transform_3(%arg0: i32) -> (i32, i32) {
    %c0_i32 = arith.constant 0 : i32
    %c0_i32_0 = arith.constant 0 : i32
    %c0_i32_1 = arith.constant 0 : i32
    return %c0_i32, %c0_i32_0 : i32, i32
  }
  func.func @transform_4(%arg0: i32) -> (i32, i32) {
    %c0_i32 = arith.constant 0 : i32
    %c0_i32_0 = arith.constant 0 : i32
    %c0_i32_1 = arith.constant 0 : i32
    return %c0_i32, %c0_i32_0 : i32, i32
  }
  func.func @transform_5(%arg0: i32) -> (i32, i32) {
    %c0_i32 = arith.constant 0 : i32
    %c0_i32_0 = arith.constant 0 : i32
    %c0_i32_1 = arith.constant 0 : i32
    return %c0_i32, %c0_i32_0 : i32, i32
  }
  func.func @transform_6(%arg0: i32) -> (i32, i32) {
    %c0_i32 = arith.constant 0 : i32
    %c0_i32_0 = arith.constant 0 : i32
    %c0_i32_1 = arith.constant 0 : i32
    return %c0_i32, %c0_i32_0 : i32, i32
  }
  func.func @transform_7(%arg0: i32) -> (i32, i32) {
    %c0_i32 = arith.constant 0 : i32
    %c0_i32_0 = arith.constant 0 : i32
    %c0_i32_1 = arith.constant 0 : i32
    return %c0_i32, %c0_i32_0 : i32, i32
  }
  func.func @transform_8(%arg0: i32) -> (i32, i32) {
    %c0_i32 = arith.constant 0 : i32
    %c0_i32_0 = arith.constant 0 : i32
    %c0_i32_1 = arith.constant 0 : i32
    return %c0_i32, %c0_i32_0 : i32, i32
  }
  func.func @transform_9(%arg0: i32) -> (i32, i32) {
    %c0_i32 = arith.constant 0 : i32
    %c0_i32_0 = arith.constant 0 : i32
    %c0_i32_1 = arith.constant 0 : i32
    return %c0_i32, %c0_i32_0 : i32, i32
  }
  func.func @transform_10(%arg0: i32) -> (i32, i32) {
    %c0_i32 = arith.constant 0 : i32
    %c0_i32_0 = arith.constant 0 : i32
    %c0_i32_1 = arith.constant 0 : i32
    return %c0_i32, %c0_i32_0 : i32, i32
  }
  func.func @transform_11(%arg0: i32) -> (i32, i32) {
    %c0_i32 = arith.constant 0 : i32
    %c0_i32_0 = arith.constant 0 : i32
    %c0_i32_1 = arith.constant 0 : i32
    return %c0_i32, %c0_i32_0 : i32, i32
  }
  func.func @transform_12(%arg0: i32) -> (i32, i32) {
    %c0_i32 = arith.constant 0 : i32
    %c0_i32_0 = arith.constant 0 : i32
    %c0_i32_1 = arith.constant 0 : i32
    return %c0_i32, %c0_i32_0 : i32, i32
  }
  func.func @transform_13(%arg0: i32) -> (i32, i32) {
    %c0_i32 = arith.constant 0 : i32
    %c0_i32_0 = arith.constant 0 : i32
    %c0_i32_1 = arith.constant 0 : i32
    return %c0_i32, %c0_i32_0 : i32, i32
  }
  func.func @transform_14(%arg0: i32) -> (i32, i32) {
    %c0_i32 = arith.constant 0 : i32
    %c0_i32_0 = arith.constant 0 : i32
    %c0_i32_1 = arith.constant 0 : i32
    return %c0_i32, %c0_i32_0 : i32, i32
  }
  func.func @transform_15(%arg0: i32) -> (i32, i32) {
    %c0_i32 = arith.constant 0 : i32
    %c0_i32_0 = arith.constant 0 : i32
    return %arg0, %c0_i32 : i32, i32
  }
}

</mosaic_0001>

<llo_original>
// kernel: tpu_custom_call.1
$region0: #{tpu_custom_call.1}
  #allocation0 [shape = 'u32[]', space=smem, size = 0x4, offset = 0x4, fixed_abs, tag = 'smem constant byte address 0x4 - core index']
  #allocation1 [shape = 'u32[144,128]{1,0:T(1,128)}', space=vmem, size = 0x12000, scoped, tag = 'internal scratch']
  %s0 = inlined_call_operand.vmem [shape: f32[16,16], index: 0, kind: input, shape index: {}]
  %s1 = inlined_call_operand.vmem [shape: f32[16,32], index: 1, kind: input, shape index: {}]
  %s2 = inlined_call_operand.vmem [shape: f32[1,32], index: 2, kind: input, shape index: {}]
  %s3 = inlined_call_operand.vmem [shape: f32[32,96], index: 3, kind: input, shape index: {}]
  %s4 = inlined_call_operand.vmem [shape: f32[1,96], index: 4, kind: input, shape index: {}]
  %s5 = inlined_call_operand.vmem [shape: f32[32,32], index: 5, kind: input, shape index: {}]
  %s6 = inlined_call_operand.vmem [shape: f32[1,32], index: 6, kind: input, shape index: {}]
  %s7 = inlined_call_operand.vmem [shape: f32[32,128], index: 7, kind: input, shape index: {}]
  %s8 = inlined_call_operand.vmem [shape: f32[1,128], index: 8, kind: input, shape index: {}]
  %s9 = inlined_call_operand.vmem [shape: f32[128,32], index: 9, kind: input, shape index: {}]
  %s10 = inlined_call_operand.vmem [shape: f32[1,32], index: 10, kind: input, shape index: {}]
  %s11 = inlined_call_operand.vmem [shape: f32[1,32], index: 11, kind: input, shape index: {}]
  %s12 = inlined_call_operand.vmem [shape: f32[1,32], index: 12, kind: input, shape index: {}]
  %s13 = inlined_call_operand.vmem [shape: f32[1,32], index: 13, kind: input, shape index: {}]
  %s14 = inlined_call_operand.vmem [shape: f32[1,32], index: 14, kind: input, shape index: {}]
  %s15 = inlined_call_operand.hbm [shape: f32[16,32], index: 15, kind: output, shape index: {}]
  %s16 = sld [smem:[#allocation0]]
  $region93: #{tpu_custom_call.1} parent=0
    _
  %s18 = ssub.s32 1, %s16
  %s19 = scalar_select 0, %s18, %s16
  $region1: #{tpu_custom_call.1} parent=0
    #allocation2 [shape = 'u8[8192]{0}', space=vmem, size = 0x2000, scoped, tag = 'output window, operand 0']
    #allocation3 [shape = 's32[2]{0}', space=sflag, size = 0x8, scoped, tag = 'scoped memory for tpu_custom_call.1']
    %20 = vsyncpa [#allocation3], 0
    %s21 = scalar_lea.sflag [#allocation3], 1
    %22 = vsyncpa %s21, 0
    loop: start=0, step=1, limit=4
    $region2: #{tpu_custom_call.1} parent=1 // loop_pre_header
      _
    $region3: #{tpu_custom_call.1} parent=1 // loop_header
      %s24 = sphi 0, %s28
      %p25 = scmp.ge.s32.totalorder %s24, 4
      %s34 = sphi 0, %s36
      %s37 = sphi 0, %s34
      %s38 = sphi 0, %s37
      %s54 = sphi 0, %s38
      %s58 = sphi 0, %s58
      %s60 = sphi 0, %s58
      %s61 = sphi 0, %s60
      %s75 = sphi 0, %s61
      %s79 = sphi 0, %s79
      %s81 = sphi 0, %s79
      %s82 = sphi 0, %s81
      %s96 = sphi 0, %s82
      %s100 = sphi 0, %s100
      %s102 = sphi 0, %s100
      %s103 = sphi 0, %s102
      %s117 = sphi 0, %s103
      %s121 = sphi 0, %s121
      %s123 = sphi 0, %s121
      %s124 = sphi 0, %s123
      %s138 = sphi 0, %s124
      %s142 = sphi 0, %s142
      %s144 = sphi 0, %s142
      %s145 = sphi 0, %s144
      %s159 = sphi 0, %s145
      %s163 = sphi 0, %s163
      %s165 = sphi 0, %s163
      %s166 = sphi 0, %s165
      %s180 = sphi 0, %s166
      %s184 = sphi 0, %s184
      %s186 = sphi 0, %s184
      %s187 = sphi 0, %s186
      %s201 = sphi 0, %s187
      %s205 = sphi 0, %s205
      %s207 = sphi 0, %s205
      %s208 = sphi 0, %s207
      %s222 = sphi 0, %s208
      %s226 = sphi 0, %s226
      %s228 = sphi 0, %s226
      %s229 = sphi 0, %s228
      %s243 = sphi 0, %s229
      %s247 = sphi 0, %s247
      %s249 = sphi 0, %s247
      %s250 = sphi 0, %s249
      %s264 = sphi 0, %s250
      %s268 = sphi 0, %s268
      %s270 = sphi 0, %s268
      %s271 = sphi 0, %s270
      %s285 = sphi 0, %s271
      %s289 = sphi 0, %s289
      %s291 = sphi 0, %s289
      %s292 = sphi 0, %s291
      %s306 = sphi 0, %s292
      %s310 = sphi 0, %s310
      %s312 = sphi 0, %s310
      %s313 = sphi 0, %s312
      %s327 = sphi 0, %s313
      %s331 = sphi 0, %s331
      %s333 = sphi 0, %s331
      %s334 = sphi 0, %s333
      %s348 = sphi 0, %s334
      %s354 = sphi 0, %s356
      %s357 = sphi 0, %s354
      %s358 = sphi 0, %s357
      %s374 = sphi 0, %s358
    $region4: #{tpu_custom_call.1} parent=1 // loop_header_branch
      %27 = sbr.rel (%p25) target = $region8
    $region5: #{tpu_custom_call.1} parent=1 // loop_body
      %s29 = ssub.s32 %s24, 1
      %s30 = ssub.s32 %s24, 2
      %s31 = sadd.s32 %s24, 1
      %s32 = ssub.s32 %s24, %s31
      %p33 = scmp.eq.s32.totalorder %s32, 0
      %s35 = sadd.s32 %s34, 1
      %s36 = scalar_select %p33, %s34, %s35
      %p39 = pneg %p33
      %p40 = scmp.eq.s32.totalorder %s24, 1
      %p41 = por %p39, %p40
      %p42 = scmp.ne.s32.totalorder %s34, %s37
      %p43 = scmp.eq.s32.totalorder %s24, 0
      %p44 = por %p42, %p43
      %p45 = scmp.ne.s32.totalorder %s34, %s37
      %p46 = scmp.eq.s32.totalorder %s29, 1
      %p47 = por %p45, %p46
      %p48 = scmp.ne.s32.totalorder %s37, %s38
      %p49 = scmp.eq.s32.totalorder %s29, 0
      %p50 = por %p48, %p49
      %p51 = scmp.ne.s32.totalorder %s37, %s38
      %p52 = scmp.eq.s32.totalorder %s30, 1
      %p53 = por %p51, %p52
      %p55 = scmp.ne.s32.totalorder %s38, %s54
      %p56 = scmp.eq.s32.totalorder %s30, 0
      %p57 = por %p55, %p56
      %s59 = sadd.s32 %s58, 1
      %p62 = scmp.eq.s32.totalorder %s24, 1
      %p63 = scmp.ne.s32.totalorder %s58, %s60
      %p64 = scmp.eq.s32.totalorder %s24, 0
      %p65 = por %p63, %p64
      %p66 = scmp.ne.s32.totalorder %s58, %s60
      %p67 = scmp.eq.s32.totalorder %s29, 1
      %p68 = por %p66, %p67
      %p69 = scmp.ne.s32.totalorder %s60, %s61
      %p70 = scmp.eq.s32.totalorder %s29, 0
      %p71 = por %p69, %p70
      %p72 = scmp.ne.s32.totalorder %s60, %s61
      %p73 = scmp.eq.s32.totalorder %s30, 1
      %p74 = por %p72, %p73
      %p76 = scmp.ne.s32.totalorder %s61, %s75
      %p77 = scmp.eq.s32.totalorder %s30, 0
      %p78 = por %p76, %p77
      %s80 = sadd.s32 %s79, 1
      %p83 = scmp.eq.s32.totalorder %s24, 1
      %p84 = scmp.ne.s32.totalorder %s79, %s81
      %p85 = scmp.eq.s32.totalorder %s24, 0
      %p86 = por %p84, %p85
      %p87 = scmp.ne.s32.totalorder %s79, %s81
      %p88 = scmp.eq.s32.totalorder %s29, 1
      %p89 = por %p87, %p88
      %p90 = scmp.ne.s32.totalorder %s81, %s82
      %p91 = scmp.eq.s32.totalorder %s29, 0
      %p92 = por %p90, %p91
      %p93 = scmp.ne.s32.totalorder %s81, %s82
      %p94 = scmp.eq.s32.totalorder %s30, 1
      %p95 = por %p93, %p94
      %p97 = scmp.ne.s32.totalorder %s82, %s96
      %p98 = scmp.eq.s32.totalorder %s30, 0
      %p99 = por %p97, %p98
      %s101 = sadd.s32 %s100, 1
      %p104 = scmp.eq.s32.totalorder %s24, 1
      %p105 = scmp.ne.s32.totalorder %s100, %s102
      %p106 = scmp.eq.s32.totalorder %s24, 0
      %p107 = por %p105, %p106
      %p108 = scmp.ne.s32.totalorder %s100, %s102
      %p109 = scmp.eq.s32.totalorder %s29, 1
      %p110 = por %p108, %p109
      %p111 = scmp.ne.s32.totalorder %s102, %s103
      %p112 = scmp.eq.s32.totalorder %s29, 0
      %p113 = por %p111, %p112
      %p114 = scmp.ne.s32.totalorder %s102, %s103
      %p115 = scmp.eq.s32.totalorder %s30, 1
      %p116 = por %p114, %p115
      %p118 = scmp.ne.s32.totalorder %s103, %s117
      %p119 = scmp.eq.s32.totalorder %s30, 0
      %p120 = por %p118, %p119
      %s122 = sadd.s32 %s121, 1
      %p125 = scmp.eq.s32.totalorder %s24, 1
      %p126 = scmp.ne.s32.totalorder %s121, %s123
      %p127 = scmp.eq.s32.totalorder %s24, 0
      %p128 = por %p126, %p127
      %p129 = scmp.ne.s32.totalorder %s121, %s123
      %p130 = scmp.eq.s32.totalorder %s29, 1
      %p131 = por %p129, %p130
      %p132 = scmp.ne.s32.totalorder %s123, %s124
      %p133 = scmp.eq.s32.totalorder %s29, 0
      %p134 = por %p132, %p133
      %p135 = scmp.ne.s32.totalorder %s123, %s124
      %p136 = scmp.eq.s32.totalorder %s30, 1
      %p137 = por %p135, %p136
      %p139 = scmp.ne.s32.totalorder %s124, %s138
      %p140 = scmp.eq.s32.totalorder %s30, 0
      %p141 = por %p139, %p140
      %s143 = sadd.s32 %s142, 1
      %p146 = scmp.eq.s32.totalorder %s24, 1
      %p147 = scmp.ne.s32.totalorder %s142, %s144
      %p148 = scmp.eq.s32.totalorder %s24, 0
      %p149 = por %p147, %p148
      %p150 = scmp.ne.s32.totalorder %s142, %s144
      %p151 = scmp.eq.s32.totalorder %s29, 1
      %p152 = por %p150, %p151
      %p153 = scmp.ne.s32.totalorder %s144, %s145
      %p154 = scmp.eq.s32.totalorder %s29, 0
      %p155 = por %p153, %p154
      %p156 = scmp.ne.s32.totalorder %s144, %s145
      %p157 = scmp.eq.s32.totalorder %s30, 1
      %p158 = por %p156, %p157
      %p160 = scmp.ne.s32.totalorder %s145, %s159
      %p161 = scmp.eq.s32.totalorder %s30, 0
      %p162 = por %p160, %p161
      %s164 = sadd.s32 %s163, 1
      %p167 = scmp.eq.s32.totalorder %s24, 1
      %p168 = scmp.ne.s32.totalorder %s163, %s165
      %p169 = scmp.eq.s32.totalorder %s24, 0
      %p170 = por %p168, %p169
      %p171 = scmp.ne.s32.totalorder %s163, %s165
      %p172 = scmp.eq.s32.totalorder %s29, 1
      %p173 = por %p171, %p172
      %p174 = scmp.ne.s32.totalorder %s165, %s166
      %p175 = scmp.eq.s32.totalorder %s29, 0
      %p176 = por %p174, %p175
      %p177 = scmp.ne.s32.totalorder %s165, %s166
      %p178 = scmp.eq.s32.totalorder %s30, 1
      %p179 = por %p177, %p178
      %p181 = scmp.ne.s32.totalorder %s166, %s180
      %p182 = scmp.eq.s32.totalorder %s30, 0
      %p183 = por %p181, %p182
      %s185 = sadd.s32 %s184, 1
      %p188 = scmp.eq.s32.totalorder %s24, 1
      %p189 = scmp.ne.s32.totalorder %s184, %s186
      %p190 = scmp.eq.s32.totalorder %s24, 0
      %p191 = por %p189, %p190
      %p192 = scmp.ne.s32.totalorder %s184, %s186
      %p193 = scmp.eq.s32.totalorder %s29, 1
      %p194 = por %p192, %p193
      %p195 = scmp.ne.s32.totalorder %s186, %s187
      %p196 = scmp.eq.s32.totalorder %s29, 0
      %p197 = por %p195, %p196
      %p198 = scmp.ne.s32.totalorder %s186, %s187
      %p199 = scmp.eq.s32.totalorder %s30, 1
      %p200 = por %p198, %p199
      %p202 = scmp.ne.s32.totalorder %s187, %s201
      %p203 = scmp.eq.s32.totalorder %s30, 0
      %p204 = por %p202, %p203
      %s206 = sadd.s32 %s205, 1
      %p209 = scmp.eq.s32.totalorder %s24, 1
      %p210 = scmp.ne.s32.totalorder %s205, %s207
      %p211 = scmp.eq.s32.totalorder %s24, 0
      %p212 = por %p210, %p211
      %p213 = scmp.ne.s32.totalorder %s205, %s207
      %p214 = scmp.eq.s32.totalorder %s29, 1
      %p215 = por %p213, %p214
      %p216 = scmp.ne.s32.totalorder %s207, %s208
      %p217 = scmp.eq.s32.totalorder %s29, 0
      %p218 = por %p216, %p217
      %p219 = scmp.ne.s32.totalorder %s207, %s208
      %p220 = scmp.eq.s32.totalorder %s30, 1
      %p221 = por %p219, %p220
      %p223 = scmp.ne.s32.totalorder %s208, %s222
      %p224 = scmp.eq.s32.totalorder %s30, 0
      %p225 = por %p223, %p224
      %s227 = sadd.s32 %s226, 1
      %p230 = scmp.eq.s32.totalorder %s24, 1
      %p231 = scmp.ne.s32.totalorder %s226, %s228
      %p232 = scmp.eq.s32.totalorder %s24, 0
      %p233 = por %p231, %p232
      %p234 = scmp.ne.s32.totalorder %s226, %s228
      %p235 = scmp.eq.s32.totalorder %s29, 1
      %p236 = por %p234, %p235
      %p237 = scmp.ne.s32.totalorder %s228, %s229
      %p238 = scmp.eq.s32.totalorder %s29, 0
      %p239 = por %p237, %p238
      %p240 = scmp.ne.s32.totalorder %s228, %s229
      %p241 = scmp.eq.s32.totalorder %s30, 1
      %p242 = por %p240, %p241
      %p244 = scmp.ne.s32.totalorder %s229, %s243
      %p245 = scmp.eq.s32.totalorder %s30, 0
      %p246 = por %p244, %p245
      %s248 = sadd.s32 %s247, 1
      %p251 = scmp.eq.s32.totalorder %s24, 1
      %p252 = scmp.ne.s32.totalorder %s247, %s249
      %p253 = scmp.eq.s32.totalorder %s24, 0
      %p254 = por %p252, %p253
      %p255 = scmp.ne.s32.totalorder %s247, %s249
      %p256 = scmp.eq.s32.totalorder %s29, 1
      %p257 = por %p255, %p256
      %p258 = scmp.ne.s32.totalorder %s249, %s250
      %p259 = scmp.eq.s32.totalorder %s29, 0
      %p260 = por %p258, %p259
      %p261 = scmp.ne.s32.totalorder %s249, %s250
      %p262 = scmp.eq.s32.totalorder %s30, 1
      %p263 = por %p261, %p262
      %p265 = scmp.ne.s32.totalorder %s250, %s264
      %p266 = scmp.eq.s32.totalorder %s30, 0
      %p267 = por %p265, %p266
      %s269 = sadd.s32 %s268, 1
      %p272 = scmp.eq.s32.totalorder %s24, 1
      %p273 = scmp.ne.s32.totalorder %s268, %s270
      %p274 = scmp.eq.s32.totalorder %s24, 0
      %p275 = por %p273, %p274
      %p276 = scmp.ne.s32.totalorder %s268, %s270
      %p277 = scmp.eq.s32.totalorder %s29, 1
      %p278 = por %p276, %p277
      %p279 = scmp.ne.s32.totalorder %s270, %s271
      %p280 = scmp.eq.s32.totalorder %s29, 0
      %p281 = por %p279, %p280
      %p282 = scmp.ne.s32.totalorder %s270, %s271
      %p283 = scmp.eq.s32.totalorder %s30, 1
      %p284 = por %p282, %p283
      %p286 = scmp.ne.s32.totalorder %s271, %s285
      %p287 = scmp.eq.s32.totalorder %s30, 0
      %p288 = por %p286, %p287
      %s290 = sadd.s32 %s289, 1
      %p293 = scmp.eq.s32.totalorder %s24, 1
      %p294 = scmp.ne.s32.totalorder %s289, %s291
      %p295 = scmp.eq.s32.totalorder %s24, 0
      %p296 = por %p294, %p295
      %p297 = scmp.ne.s32.totalorder %s289, %s291
      %p298 = scmp.eq.s32.totalorder %s29, 1
      %p299 = por %p297, %p298
      %p300 = scmp.ne.s32.totalorder %s291, %s292
      %p301 = scmp.eq.s32.totalorder %s29, 0
      %p302 = por %p300, %p301
      %p303 = scmp.ne.s32.totalorder %s291, %s292
      %p304 = scmp.eq.s32.totalorder %s30, 1
      %p305 = por %p303, %p304
      %p307 = scmp.ne.s32.totalorder %s292, %s306
      %p308 = scmp.eq.s32.totalorder %s30, 0
      %p309 = por %p307, %p308
      %s311 = sadd.s32 %s310, 1
      %p314 = scmp.eq.s32.totalorder %s24, 1
      %p315 = scmp.ne.s32.totalorder %s310, %s312
      %p316 = scmp.eq.s32.totalorder %s24, 0
      %p317 = por %p315, %p316
      %p318 = scmp.ne.s32.totalorder %s310, %s312
      %p319 = scmp.eq.s32.totalorder %s29, 1
      %p320 = por %p318, %p319
      %p321 = scmp.ne.s32.totalorder %s312, %s313
      %p322 = scmp.eq.s32.totalorder %s29, 0
      %p323 = por %p321, %p322
      %p324 = scmp.ne.s32.totalorder %s312, %s313
      %p325 = scmp.eq.s32.totalorder %s30, 1
      %p326 = por %p324, %p325
      %p328 = scmp.ne.s32.totalorder %s313, %s327
      %p329 = scmp.eq.s32.totalorder %s30, 0
      %p330 = por %p328, %p329
      %s332 = sadd.s32 %s331, 1
      %p335 = scmp.eq.s32.totalorder %s24, 1
      %p336 = scmp.ne.s32.totalorder %s331, %s333
      %p337 = scmp.eq.s32.totalorder %s24, 0
      %p338 = por %p336, %p337
      %p339 = scmp.ne.s32.totalorder %s331, %s333
      %p340 = scmp.eq.s32.totalorder %s29, 1
      %p341 = por %p339, %p340
      %p342 = scmp.ne.s32.totalorder %s333, %s334
      %p343 = scmp.eq.s32.totalorder %s29, 0
      %p344 = por %p342, %p343
      %p345 = scmp.ne.s32.totalorder %s333, %s334
      %p346 = scmp.eq.s32.totalorder %s30, 1
      %p347 = por %p345, %p346
      %p349 = scmp.ne.s32.totalorder %s334, %s348
      %p350 = scmp.eq.s32.totalorder %s30, 0
      %p351 = por %p349, %p350
      %s352 = ssub.s32 %s24, %s31
      %p353 = scmp.eq.s32.totalorder %s352, 0
      %s355 = sadd.s32 %s354, 1
      %s356 = scalar_select %p353, %s354, %s355
      %p359 = pneg %p353
      %p360 = scmp.eq.s32.totalorder %s24, 1
      %p361 = por %p359, %p360
      %p362 = scmp.ne.s32.totalorder %s354, %s357
      %p363 = scmp.eq.s32.totalorder %s24, 0
      %p364 = por %p362, %p363
      %p365 = scmp.ne.s32.totalorder %s354, %s357
      %p366 = scmp.eq.s32.totalorder %s29, 1
      %p367 = por %p365, %p366
      %p368 = scmp.ne.s32.totalorder %s357, %s358
      %p369 = scmp.eq.s32.totalorder %s29, 0
      %p370 = por %p368, %p369
      %p371 = scmp.ne.s32.totalorder %s357, %s358
      %p372 = scmp.eq.s32.totalorder %s30, 1
      %p373 = por %p371, %p372
      %p375 = scmp.ne.s32.totalorder %s358, %s374
      %p376 = scmp.eq.s32.totalorder %s30, 0
      %p377 = por %p375, %p376
      %p378 = scmp.le.s32.totalorder 1, %s24
      %p379 = scmp.lt.s32.totalorder %s24, 3
      %p380 = pnand %p378, %p379
      %p381 = pneg %p380
      // Predicated region
      $region9: #{tpu_custom_call.1} parent=5 // pred_check
        _
      $region10: #{tpu_custom_call.1} parent=5 // pred_check_branch
        %383 = sbr.rel (%p380) target = $region12
      $region11: #{tpu_custom_call.1} parent=5 // pred_region
        %s384 = ssub.s32 %s24, 1
        // Predicated region
        $region13: #{tpu_custom_call.1} parent=11 // pred_check
          %p385 = pneg %p71
        $region14: #{tpu_custom_call.1} parent=11 // pred_check_branch
          %387 = sbr.rel (%p385) target = $region16
        $region15: #{tpu_custom_call.1} parent=11 // pred_region
          _
        $region16: #{tpu_custom_call.1} parent=11 // pred_fallthru
          _
        // Predicated region
        $region17: #{tpu_custom_call.1} parent=11 // pred_check
          %p388 = pneg %p92
        $region18: #{tpu_custom_call.1} parent=11 // pred_check_branch
          %390 = sbr.rel (%p388) target = $region20
        $region19: #{tpu_custom_call.1} parent=11 // pred_region
          _
        $region20: #{tpu_custom_call.1} parent=11 // pred_fallthru
          _
        // Predicated region
        $region21: #{tpu_custom_call.1} parent=11 // pred_check
          %p391 = pneg %p113
        $region22: #{tpu_custom_call.1} parent=11 // pred_check_branch
          %393 = sbr.rel (%p391) target = $region24
        $region23: #{tpu_custom_call.1} parent=11 // pred_region
          _
        $region24: #{tpu_custom_call.1} parent=11 // pred_fallthru
          _
        // Predicated region
        $region25: #{tpu_custom_call.1} parent=11 // pred_check
          %p394 = pneg %p134
        $region26: #{tpu_custom_call.1} parent=11 // pred_check_branch
          %396 = sbr.rel (%p394) target = $region28
        $region27: #{tpu_custom_call.1} parent=11 // pred_region
          _
        $region28: #{tpu_custom_call.1} parent=11 // pred_fallthru
          _
        // Predicated region
        $region29: #{tpu_custom_call.1} parent=11 // pred_check
          %p397 = pneg %p155
        $region30: #{tpu_custom_call.1} parent=11 // pred_check_branch
          %399 = sbr.rel (%p397) target = $region32
        $region31: #{tpu_custom_call.1} parent=11 // pred_region
          _
        $region32: #{tpu_custom_call.1} parent=11 // pred_fallthru
          _
        // Predicated region
        $region33: #{tpu_custom_call.1} parent=11 // pred_check
          %p400 = pneg %p176
        $region34: #{tpu_custom_call.1} parent=11 // pred_check_branch
          %402 = sbr.rel (%p400) target = $region36
        $region35: #{tpu_custom_call.1} parent=11 // pred_region
          _
        $region36: #{tpu_custom_call.1} parent=11 // pred_fallthru
          _
        // Predicated region
        $region37: #{tpu_custom_call.1} parent=11 // pred_check
          %p403 = pneg %p197
        $region38: #{tpu_custom_call.1} parent=11 // pred_check_branch
          %405 = sbr.rel (%p403) target = $region40
        $region39: #{tpu_custom_call.1} parent=11 // pred_region
          _
        $region40: #{tpu_custom_call.1} parent=11 // pred_fallthru
          _
        // Predicated region
        $region41: #{tpu_custom_call.1} parent=11 // pred_check
          %p406 = pneg %p218
        $region42: #{tpu_custom_call.1} parent=11 // pred_check_branch
          %408 = sbr.rel (%p406) target = $region44
        $region43: #{tpu_custom_call.1} parent=11 // pred_region
          _
        $region44: #{tpu_custom_call.1} parent=11 // pred_fallthru
          _
        // Predicated region
        $region45: #{tpu_custom_call.1} parent=11 // pred_check
          %p409 = pneg %p239
        $region46: #{tpu_custom_call.1} parent=11 // pred_check_branch
          %411 = sbr.rel (%p409) target = $region48
        $region47: #{tpu_custom_call.1} parent=11 // pred_region
          _
        $region48: #{tpu_custom_call.1} parent=11 // pred_fallthru
          _
        // Predicated region
        $region49: #{tpu_custom_call.1} parent=11 // pred_check
          %p412 = pneg %p260
        $region50: #{tpu_custom_call.1} parent=11 // pred_check_branch
          %414 = sbr.rel (%p412) target = $region52
        $region51: #{tpu_custom_call.1} parent=11 // pred_region
          _
        $region52: #{tpu_custom_call.1} parent=11 // pred_fallthru
          _
        // Predicated region
        $region53: #{tpu_custom_call.1} parent=11 // pred_check
          %p415 = pneg %p281
        $region54: #{tpu_custom_call.1} parent=11 // pred_check_branch
          %417 = sbr.rel (%p415) target = $region56
        $region55: #{tpu_custom_call.1} parent=11 // pred_region
          _
        $region56: #{tpu_custom_call.1} parent=11 // pred_fallthru
          _
        // Predicated region
        $region57: #{tpu_custom_call.1} parent=11 // pred_check
          %p418 = pneg %p302
        $region58: #{tpu_custom_call.1} parent=11 // pred_check_branch
          %420 = sbr.rel (%p418) target = $region60
        $region59: #{tpu_custom_call.1} parent=11 // pred_region
          _
        $region60: #{tpu_custom_call.1} parent=11 // pred_fallthru
          _
        // Predicated region
        $region61: #{tpu_custom_call.1} parent=11 // pred_check
          %p421 = pneg %p323
        $region62: #{tpu_custom_call.1} parent=11 // pred_check_branch
          %423 = sbr.rel (%p421) target = $region64
        $region63: #{tpu_custom_call.1} parent=11 // pred_region
          _
        $region64: #{tpu_custom_call.1} parent=11 // pred_fallthru
          _
        // Predicated region
        $region65: #{tpu_custom_call.1} parent=11 // pred_check
          %p424 = pneg %p344
        $region66: #{tpu_custom_call.1} parent=11 // pred_check_branch
          %426 = sbr.rel (%p424) target = $region68
        $region67: #{tpu_custom_call.1} parent=11 // pred_region
          _
        $region68: #{tpu_custom_call.1} parent=11 // pred_fallthru
          _
      $region12: #{tpu_custom_call.1} parent=5 // pred_fallthru
        _
      %p427 = scmp.lt.s32.totalorder %s24, 2
      // Predicated region
      $region69: #{tpu_custom_call.1} parent=5 // pred_check
        %p428 = pneg %p427
      $region70: #{tpu_custom_call.1} parent=5 // pred_check_branch
        %430 = sbr.rel (%p428) target = $region72
      $region71: #{tpu_custom_call.1} parent=5 // pred_region
        // Predicated region
        $region73: #{tpu_custom_call.1} parent=71 // pred_check
          %p431 = pneg %p44
        $region74: #{tpu_custom_call.1} parent=71 // pred_check_branch
          %433 = sbr.rel (%p431) target = $region76
        $region75: #{tpu_custom_call.1} parent=71 // pred_region
          %p434 = scmp.lt.s32.totalorder %s24, 1
          %s435 = scalar_select %p434, %s24, 1
          %s436 = smul.addr %s435, 8
          %s437 = scalar_lea.vmem %s0, %s436
        $region76: #{tpu_custom_call.1} parent=71 // pred_fallthru
          _
      $region72: #{tpu_custom_call.1} parent=5 // pred_fallthru
        _
      %p438 = scmp.le.s32.totalorder 1, %s24
      %p439 = scmp.lt.s32.totalorder %s24, 3
      %p440 = pnand %p438, %p439
      %p441 = pneg %p440
      // Predicated region
      $region77: #{tpu_custom_call.1} parent=5 // pred_check
        _
      $region78: #{tpu_custom_call.1} parent=5 // pred_check_branch
        %443 = sbr.rel (%p440) target = $region80
      $region79: #{tpu_custom_call.1} parent=5 // pred_region
        %s444 = ssub.s32 %s24, 1
        %p445 = scmp.lt.s32.totalorder %s29, 1
        %s446 = scalar_select %p445, %s29, 1
        %s447 = smul.addr %s446, 8
        %s448 = scalar_lea.vmem %s0, %s447
        %p449 = pneg %p50
        %p450 = pneg %p47
        %p451 = pneg %p71
        %p452 = pneg %p68
        %p453 = pneg %p92
        %p454 = pneg %p89
        %p455 = pneg %p113
        %p456 = pneg %p110
        %p457 = pneg %p134
        %p458 = pneg %p131
        %p459 = pneg %p155
        %p460 = pneg %p152
        %p461 = pneg %p176
        %p462 = pneg %p173
        %p463 = pneg %p197
        %p464 = pneg %p194
        %p465 = pneg %p218
        %p466 = pneg %p215
        %p467 = pneg %p239
        %p468 = pneg %p236
        %p469 = pneg %p260
        %p470 = pneg %p257
        %p471 = pneg %p281
        %p472 = pneg %p278
        %p473 = pneg %p302
        %p474 = pneg %p299
        %p475 = pneg %p323
        %p476 = pneg %p320
        %p477 = pneg %p344
        %p478 = pneg %p341
        %p479 = pneg %p370
        %p480 = pneg %p367
        %s481 = sand.u32 %s357, 1
        %s482 = scalar_lea.sflag [#allocation3], %s481
        %s483 = sand.u32 %s357, 1
        %s484 = smul.addr %s483, 8
        %s485 = scalar_lea.vmem [#allocation2], %s484
        %p486 = scmp.lt.s32.totalorder %s29, 1
        %s487 = scalar_select %p486, %s29, 1
        %s488 = smul.addr %s487, 8
        %s489 = scalar_lea.vmem %s0, %s488
        %v490 = vld [vmem:[%s489] sm:$0xff]
        %v491 = vld [vmem:[%s1] sm:$0xff]
        %v492 = vld [vmem:[%s1 + $0x8] sm:$0xff]
        %v493 = vld [vmem:[%s2] sm:$0x1]
        %v495 = vlaneseq
        %v496 = vshrl.u32 %v495, 7
        %v497 = vsub.s32 0, %v496
        %v498 = vrot.slane %v493, %v497
        %vm500 = vcmask 130048
        %v502 = vsel %vm500, %v490, 0
        %504 = vmatprep.subr.mxu0 0.0
        %505 = vmatpush1.msra.mxu0 %v491
        %506 = vmatprep.subr.mxu0 0.0
        %507 = vmatpush1.msra.mxu0 %v492
        %508 = vmatprep.subr.mxu0 0.0
        %509 = vmatpush1.msra.mxu0 0.0
        %510 = vmatprep.subr.mxu0 0.0
        %511 = vmatpush1.msra.mxu0 0.0
        %512 = vmatprep.subr.mxu0 0.0
        %513 = vmatpush1.msra.mxu0 0.0
        %514 = vmatprep.subr.mxu0 0.0
        %515 = vmatpush1.msra.mxu0 0.0
        %516 = vmatprep.subr.mxu0 0.0
        %517 = vmatpush1.msra.mxu0 0.0
        %518 = vmatprep.subr.mxu0 0.0
        %519 = vmatpush1.msra.mxu0 0.0
        %520 = vmatprep.subr.mxu0 0.0
        %521 = vmatpush1.msra.mxu0 0.0
        %522 = vmatprep.subr.mxu0 0.0
        %523 = vmatpush1.msra.mxu0 0.0
        %524 = vmatprep.subr.mxu0 0.0
        %525 = vmatpush1.msra.mxu0 0.0
        %526 = vmatprep.subr.mxu0 0.0
        %527 = vmatpush1.msra.mxu0 0.0
        %528 = vmatprep.subr.mxu0 0.0
        %529 = vmatpush1.msra.mxu0 0.0
        %530 = vmatprep.subr.mxu0 0.0
        %531 = vmatpush1.msra.mxu0 0.0
        %532 = vmatprep.subr.mxu0 0.0
        %533 = vmatpush1.msra.mxu0 0.0
        %534 = vmatprep.subr.mxu0 0.0
        %535 = vmatpush1.msra.mxu0 0.0
        %536 = vmatprep.subr.mxu0 0.0
        %537 = vmatpush1.msra.mxu0 0.0
        %538 = vmatprep.subr.mxu0 0.0
        %539 = vmatpush1.msra.mxu0 0.0
        %540 = vmatprep.subr.mxu0 0.0
        %541 = vmatpush1.msra.mxu0 0.0
        %542 = vmatprep.subr.mxu0 0.0
        %543 = vmatpush1.msra.mxu0 0.0
        %544 = vmatprep.subr.mxu0 0.0
        %545 = vmatpush1.msra.mxu0 0.0
        %546 = vmatprep.subr.mxu0 0.0
        %547 = vmatpush1.msra.mxu0 0.0
        %548 = vmatprep.subr.mxu0 0.0
        %549 = vmatpush1.msra.mxu0 0.0
        %550 = vmatprep.subr.mxu0 0.0
        %551 = vmatpush1.msra.mxu0 0.0
        %552 = vmatprep.subr.mxu0 0.0
        %553 = vmatpush1.msra.mxu0 0.0
        %554 = vmatprep.subr.mxu0 0.0
        %555 = vmatpush1.msra.mxu0 0.0
        %556 = vmatprep.subr.mxu0 0.0
        %557 = vmatpush1.msra.mxu0 0.0
        %558 = vmatprep.subr.mxu0 0.0
        %559 = vmatpush1.msra.mxu0 0.0
        %560 = vmatprep.subr.mxu0 0.0
        %561 = vmatpush1.msra.mxu0 0.0
        %562 = vmatprep.subr.mxu0 0.0
        %563 = vmatpush1.msra.mxu0 0.0
        %564 = vmatprep.subr.mxu0 0.0
        %565 = vmatpush1.msra.mxu0 0.0
        %566 = vmatprep.subr.mxu0 0.0
        %567 = vmatpush1.msra.mxu0 0.0
        %568 = vmatprep.mubr.f32.mxu0 0.0
        %569 = vmatmul.mubr.f32.gmra.mrb[0].mxu0 %v502
        %v570 = vpop.f32.mrb[0].mxu0
        %v571 = vadd.f32 %v498, %v570
        %v572 = vpop.f32.mrb[0].mxu0
        %573 = vdwg.mxu0
        %v574 = vld [vmem:[%s3] sm:$0xff]
        %v575 = vld [vmem:[%s3 + $0x8] sm:$0xff]
        %v576 = vld [vmem:[%s3 + $0x10] sm:$0xff]
        %v577 = vld [vmem:[%s3 + $0x18] sm:$0xff]
        %v578 = vld [vmem:[%s4] sm:$0x1]
        %v580 = vlaneseq
        %v581 = vshrl.u32 %v580, 7
        %v582 = vsub.s32 0, %v581
        %v583 = vrot.slane %v578, %v582
        %vm585 = vcmask 261120
        %v587 = vsel %vm585, %v571, 0
        %589 = vmatprep.subr.mxu0 0.0
        %590 = vmatpush1.msra.mxu0 %v574
        %591 = vmatprep.subr.mxu0 0.0
        %592 = vmatpush1.msra.mxu0 %v575
        %593 = vmatprep.subr.mxu0 0.0
        %594 = vmatpush1.msra.mxu0 %v576
        %595 = vmatprep.subr.mxu0 0.0
        %596 = vmatpush1.msra.mxu0 %v577
        %597 = vmatprep.subr.mxu0 0.0
        %598 = vmatpush1.msra.mxu0 0.0
        %599 = vmatprep.subr.mxu0 0.0
        %600 = vmatpush1.msra.mxu0 0.0
        %601 = vmatprep.subr.mxu0 0.0
        %602 = vmatpush1.msra.mxu0 0.0
        %603 = vmatprep.subr.mxu0 0.0
        %604 = vmatpush1.msra.mxu0 0.0
        %605 = vmatprep.subr.mxu0 0.0
        %606 = vmatpush1.msra.mxu0 0.0
        %607 = vmatprep.subr.mxu0 0.0
        %608 = vmatpush1.msra.mxu0 0.0
        %609 = vmatprep.subr.mxu0 0.0
        %610 = vmatpush1.msra.mxu0 0.0
        %611 = vmatprep.subr.mxu0 0.0
        %612 = vmatpush1.msra.mxu0 0.0
        %613 = vmatprep.subr.mxu0 0.0
        %614 = vmatpush1.msra.mxu0 0.0
        %615 = vmatprep.subr.mxu0 0.0
        %616 = vmatpush1.msra.mxu0 0.0
        %617 = vmatprep.subr.mxu0 0.0
        %618 = vmatpush1.msra.mxu0 0.0
        %619 = vmatprep.subr.mxu0 0.0
        %620 = vmatpush1.msra.mxu0 0.0
        %621 = vmatprep.subr.mxu0 0.0
        %622 = vmatpush1.msra.mxu0 0.0
        %623 = vmatprep.subr.mxu0 0.0
        %624 = vmatpush1.msra.mxu0 0.0
        %625 = vmatprep.subr.mxu0 0.0
        %626 = vmatpush1.msra.mxu0 0.0
        %627 = vmatprep.subr.mxu0 0.0
        %628 = vmatpush1.msra.mxu0 0.0
        %629 = vmatprep.subr.mxu0 0.0
        %630 = vmatpush1.msra.mxu0 0.0
        %631 = vmatprep.subr.mxu0 0.0
        %632 = vmatpush1.msra.mxu0 0.0
        %633 = vmatprep.subr.mxu0 0.0
        %634 = vmatpush1.msra.mxu0 0.0
        %635 = vmatprep.subr.mxu0 0.0
        %636 = vmatpush1.msra.mxu0 0.0
        %637 = vmatprep.subr.mxu0 0.0
        %638 = vmatpush1.msra.mxu0 0.0
        %639 = vmatprep.subr.mxu0 0.0
        %640 = vmatpush1.msra.mxu0 0.0
        %641 = vmatprep.subr.mxu0 0.0
        %642 = vmatpush1.msra.mxu0 0.0
        %643 = vmatprep.subr.mxu0 0.0
        %644 = vmatpush1.msra.mxu0 0.0
        %645 = vmatprep.subr.mxu0 0.0
        %646 = vmatpush1.msra.mxu0 0.0
        %647 = vmatprep.subr.mxu0 0.0
        %648 = vmatpush1.msra.mxu0 0.0
        %649 = vmatprep.subr.mxu0 0.0
        %650 = vmatpush1.msra.mxu0 0.0
        %651 = vmatprep.subr.mxu0 0.0
        %652 = vmatpush1.msra.mxu0 0.0
        %653 = vmatprep.mubr.f32.mxu0 0.0
        %654 = vmatmul.mubr.f32.gmra.mrb[0].mxu0 %v587
        %v655 = vpop.f32.mrb[0].mxu0
        %v656 = vadd.f32 %v583, %v655
        %v657 = vpop.f32.mrb[0].mxu0
        %658 = vdwg.mxu0
        %660 = vrot.lane.b32.xlu0 %v656, 120
        %v661 = vpop.permute.xlu0 %660
        %663 = vrot.lane.b32.xlu0 %v656, 112
        %v664 = vpop.permute.xlu0 %663
        %666 = vrot.lane.b32.xlu0 %v656, 104
        %v667 = vpop.permute.xlu0 %666
        %v669 = vcombine.low %v656, %v664
        %v670 = vcombine.high %v656, %v664
        %v672 = vunpack.c.l.s4 1983009808
        %v673 = vunpack.c.0.s8 %v672
        %v674 = vlaneseq
        %v675 = vshrl.u32 %v674, 7
        %v676 = vsub.s32 %v673, %v675
        %v677 = vrot.slane %v669, %v676
        %v679 = vunpack.c.l.s4 1983009808
        %v680 = vunpack.c.0.s8 %v679
        %v681 = vlaneseq
        %v682 = vshrl.u32 %v681, 7
        %v683 = vsub.s32 %v680, %v682
        %v684 = vrot.slane %v670, %v683
        %v685 = vcombine.low %v661, %v667
        %v686 = vcombine.high %v661, %v667
        %v688 = vunpack.c.l.s4 1983009808
        %v689 = vunpack.c.0.s8 %v688
        %v690 = vlaneseq
        %v691 = vshrl.u32 %v690, 7
        %v692 = vsub.s32 %v689, %v691
        %v693 = vrot.slane %v685, %v692
        %v695 = vunpack.c.l.s4 1983009808
        %v696 = vunpack.c.0.s8 %v695
        %v697 = vlaneseq
        %v698 = vshrl.u32 %v697, 7
        %v699 = vsub.s32 %v696, %v698
        %v700 = vrot.slane %v686, %v699
        %v701 = vcombine.low %v677, %v693
        %v702 = vcombine.high %v677, %v693
        %v704 = vunpack.c.l.s4 1934713408
        %v705 = vunpack.c.0.s8 %v704
        %v706 = vlaneseq
        %v707 = vshrl.u32 %v706, 7
        %v708 = vsub.s32 %v705, %v707
        %v709 = vrot.slane %v701, %v708
        %v711 = vunpack.c.l.s4 1934713408
        %v712 = vunpack.c.0.s8 %v711
        %v713 = vlaneseq
        %v714 = vshrl.u32 %v713, 7
        %v715 = vsub.s32 %v712, %v714
        %v716 = vrot.slane %v702, %v715
        %v717 = vcombine.low %v684, %v700
        %v718 = vcombine.high %v684, %v700
        %v720 = vunpack.c.l.s4 1934713408
        %v721 = vunpack.c.0.s8 %v720
        %v722 = vlaneseq
        %v723 = vshrl.u32 %v722, 7
        %v724 = vsub.s32 %v721, %v723
        %v725 = vrot.slane %v717, %v724
        %v727 = vunpack.c.l.s4 1934713408
        %v728 = vunpack.c.0.s8 %v727
        %v729 = vlaneseq
        %v730 = vshrl.u32 %v729, 7
        %v731 = vsub.s32 %v728, %v730
        %v732 = vrot.slane %v718, %v731
        %v733 = vcombine.high %v709, 0.0
        %v734 = vcombine.high %v716, 0.0
        %v735 = vcombine.high %v725, 0.0
        %v736 = vcombine.high %v732, 0.0
        %v737 = vcombine.low %v709, %v716
        %v739 = vunpack.c.l.s4 1983009808
        %v740 = vunpack.c.0.s8 %v739
        %v741 = vlaneseq
        %v742 = vshrl.u32 %v741, 7
        %v743 = vsub.s32 %v740, %v742
        %v744 = vrot.slane %v737, %v743
        %v745 = vcombine.low %v733, %v734
        %v747 = vunpack.c.l.s4 1983009808
        %v748 = vunpack.c.0.s8 %v747
        %v749 = vlaneseq
        %v750 = vshrl.u32 %v749, 7
        %v751 = vsub.s32 %v748, %v750
        %v752 = vrot.slane %v745, %v751
        %v753 = vcombine.low %v725, %v732
        %v755 = vunpack.c.l.s4 1983009808
        %v756 = vunpack.c.0.s8 %v755
        %v757 = vlaneseq
        %v758 = vshrl.u32 %v757, 7
        %v759 = vsub.s32 %v756, %v758
        %v760 = vrot.slane %v753, %v759
        %v761 = vcombine.low %v735, %v736
        %v763 = vunpack.c.l.s4 1983009808
        %v764 = vunpack.c.0.s8 %v763
        %v765 = vlaneseq
        %v766 = vshrl.u32 %v765, 7
        %v767 = vsub.s32 %v764, %v766
        %v768 = vrot.slane %v761, %v767
        %v769 = vcombine.low %v744, %v752
        %v770 = vcombine.high %v744, %v752
        %v772 = vunpack.c.l.s4 1934713408
        %v773 = vunpack.c.0.s8 %v772
        %v774 = vlaneseq
        %v775 = vshrl.u32 %v774, 7
        %v776 = vsub.s32 %v773, %v775
        %v777 = vrot.slane %v769, %v776
        %v779 = vunpack.c.l.s4 1934713408
        %v780 = vunpack.c.0.s8 %v779
        %v781 = vlaneseq
        %v782 = vshrl.u32 %v781, 7
        %v783 = vsub.s32 %v780, %v782
        %v784 = vrot.slane %v770, %v783
        %v785 = vcombine.low %v760, %v768
        %v786 = vcombine.high %v760, %v768
        %v788 = vunpack.c.l.s4 1934713408
        %v789 = vunpack.c.0.s8 %v788
        %v790 = vlaneseq
        %v791 = vshrl.u32 %v790, 7
        %v792 = vsub.s32 %v789, %v791
        %v793 = vrot.slane %v785, %v792
        %v795 = vunpack.c.l.s4 1934713408
        %v796 = vunpack.c.0.s8 %v795
        %v797 = vlaneseq
        %v798 = vshrl.u32 %v797, 7
        %v799 = vsub.s32 %v796, %v798
        %v800 = vrot.slane %v786, %v799
        %v801 = vcombine.low %v777, %v793
        %v802 = vcombine.high %v777, %v793
        %v803 = vcombine.low %v784, %v800
        %v804 = vcombine.high %v784, %v800
        %805 = vrot.lane.b32.xlu0 %v656, 96
        %v806 = vpop.permute.xlu0 %805
        %807 = vrot.lane.b32.xlu0 %v661, 96
        %v808 = vpop.permute.xlu0 %807
        %809 = vrot.lane.b32.xlu0 %v664, 96
        %v810 = vpop.permute.xlu0 %809
        %811 = vrot.lane.b32.xlu0 %v667, 96
        %v812 = vpop.permute.xlu0 %811
        %v817 = vcombine.low %v806, %v810
        %v818 = vcombine.high %v806, %v810
        %v820 = vunpack.c.l.s4 1983009808
        %v821 = vunpack.c.0.s8 %v820
        %v822 = vlaneseq
        %v823 = vshrl.u32 %v822, 7
        %v824 = vsub.s32 %v821, %v823
        %v825 = vrot.slane %v817, %v824
        %v827 = vunpack.c.l.s4 1983009808
        %v828 = vunpack.c.0.s8 %v827
        %v829 = vlaneseq
        %v830 = vshrl.u32 %v829, 7
        %v831 = vsub.s32 %v828, %v830
        %v832 = vrot.slane %v818, %v831
        %v833 = vcombine.low %v808, %v812
        %v834 = vcombine.high %v808, %v812
        %v836 = vunpack.c.l.s4 1983009808
        %v837 = vunpack.c.0.s8 %v836
        %v838 = vlaneseq
        %v839 = vshrl.u32 %v838, 7
        %v840 = vsub.s32 %v837, %v839
        %v841 = vrot.slane %v833, %v840
        %v843 = vunpack.c.l.s4 1983009808
        %v844 = vunpack.c.0.s8 %v843
        %v845 = vlaneseq
        %v846 = vshrl.u32 %v845, 7
        %v847 = vsub.s32 %v844, %v846
        %v848 = vrot.slane %v834, %v847
        %v849 = vcombine.low %v825, %v841
        %v850 = vcombine.high %v825, %v841
        %v852 = vunpack.c.l.s4 1934713408
        %v853 = vunpack.c.0.s8 %v852
        %v854 = vlaneseq
        %v855 = vshrl.u32 %v854, 7
        %v856 = vsub.s32 %v853, %v855
        %v857 = vrot.slane %v849, %v856
        %v859 = vunpack.c.l.s4 1934713408
        %v860 = vunpack.c.0.s8 %v859
        %v861 = vlaneseq
        %v862 = vshrl.u32 %v861, 7
        %v863 = vsub.s32 %v860, %v862
        %v864 = vrot.slane %v850, %v863
        %v865 = vcombine.low %v832, %v848
        %v866 = vcombine.high %v832, %v848
        %v868 = vunpack.c.l.s4 1934713408
        %v869 = vunpack.c.0.s8 %v868
        %v870 = vlaneseq
        %v871 = vshrl.u32 %v870, 7
        %v872 = vsub.s32 %v869, %v871
        %v873 = vrot.slane %v865, %v872
        %v875 = vunpack.c.l.s4 1934713408
        %v876 = vunpack.c.0.s8 %v875
        %v877 = vlaneseq
        %v878 = vshrl.u32 %v877, 7
        %v879 = vsub.s32 %v876, %v878
        %v880 = vrot.slane %v866, %v879
        %v881 = vcombine.high %v857, 0.0
        %v882 = vcombine.high %v864, 0.0
        %v883 = vcombine.high %v873, 0.0
        %v884 = vcombine.high %v880, 0.0
        %v885 = vcombine.low %v857, %v864
        %v887 = vunpack.c.l.s4 1983009808
        %v888 = vunpack.c.0.s8 %v887
        %v889 = vlaneseq
        %v890 = vshrl.u32 %v889, 7
        %v891 = vsub.s32 %v888, %v890
        %v892 = vrot.slane %v885, %v891
        %v893 = vcombine.low %v881, %v882
        %v895 = vunpack.c.l.s4 1983009808
        %v896 = vunpack.c.0.s8 %v895
        %v897 = vlaneseq
        %v898 = vshrl.u32 %v897, 7
        %v899 = vsub.s32 %v896, %v898
        %v900 = vrot.slane %v893, %v899
        %v901 = vcombine.low %v873, %v880
        %v903 = vunpack.c.l.s4 1983009808
        %v904 = vunpack.c.0.s8 %v903
        %v905 = vlaneseq
        %v906 = vshrl.u32 %v905, 7
        %v907 = vsub.s32 %v904, %v906
        %v908 = vrot.slane %v901, %v907
        %v909 = vcombine.low %v883, %v884
        %v911 = vunpack.c.l.s4 1983009808
        %v912 = vunpack.c.0.s8 %v911
        %v913 = vlaneseq
        %v914 = vshrl.u32 %v913, 7
        %v915 = vsub.s32 %v912, %v914
        %v916 = vrot.slane %v909, %v915
        %v917 = vcombine.low %v892, %v900
        %v918 = vcombine.high %v892, %v900
        %v920 = vunpack.c.l.s4 1934713408
        %v921 = vunpack.c.0.s8 %v920
        %v922 = vlaneseq
        %v923 = vshrl.u32 %v922, 7
        %v924 = vsub.s32 %v921, %v923
        %v925 = vrot.slane %v917, %v924
        %v927 = vunpack.c.l.s4 1934713408
        %v928 = vunpack.c.0.s8 %v927
        %v929 = vlaneseq
        %v930 = vshrl.u32 %v929, 7
        %v931 = vsub.s32 %v928, %v930
        %v932 = vrot.slane %v918, %v931
        %v933 = vcombine.low %v908, %v916
        %v934 = vcombine.high %v908, %v916
        %v936 = vunpack.c.l.s4 1934713408
        %v937 = vunpack.c.0.s8 %v936
        %v938 = vlaneseq
        %v939 = vshrl.u32 %v938, 7
        %v940 = vsub.s32 %v937, %v939
        %v941 = vrot.slane %v933, %v940
        %v943 = vunpack.c.l.s4 1934713408
        %v944 = vunpack.c.0.s8 %v943
        %v945 = vlaneseq
        %v946 = vshrl.u32 %v945, 7
        %v947 = vsub.s32 %v944, %v946
        %v948 = vrot.slane %v934, %v947
        %v949 = vcombine.low %v925, %v941
        %v950 = vcombine.high %v925, %v941
        %v951 = vcombine.low %v932, %v948
        %v952 = vcombine.high %v932, %v948
        %953 = vrot.lane.b32.xlu0 %v656, 64
        %v954 = vpop.permute.xlu0 %953
        %955 = vrot.lane.b32.xlu0 %v661, 64
        %v956 = vpop.permute.xlu0 %955
        %957 = vrot.lane.b32.xlu0 %v664, 64
        %v958 = vpop.permute.xlu0 %957
        %959 = vrot.lane.b32.xlu0 %v667, 64
        %v960 = vpop.permute.xlu0 %959
        %v965 = vcombine.low %v954, %v958
        %v966 = vcombine.high %v954, %v958
        %v968 = vunpack.c.l.s4 1983009808
        %v969 = vunpack.c.0.s8 %v968
        %v970 = vlaneseq
        %v971 = vshrl.u32 %v970, 7
        %v972 = vsub.s32 %v969, %v971
        %v973 = vrot.slane %v965, %v972
        %v975 = vunpack.c.l.s4 1983009808
        %v976 = vunpack.c.0.s8 %v975
        %v977 = vlaneseq
        %v978 = vshrl.u32 %v977, 7
        %v979 = vsub.s32 %v976, %v978
        %v980 = vrot.slane %v966, %v979
        %v981 = vcombine.low %v956, %v960
        %v982 = vcombine.high %v956, %v960
        %v984 = vunpack.c.l.s4 1983009808
        %v985 = vunpack.c.0.s8 %v984
        %v986 = vlaneseq
        %v987 = vshrl.u32 %v986, 7
        %v988 = vsub.s32 %v985, %v987
        %v989 = vrot.slane %v981, %v988
        %v991 = vunpack.c.l.s4 1983009808
        %v992 = vunpack.c.0.s8 %v991
        %v993 = vlaneseq
        %v994 = vshrl.u32 %v993, 7
        %v995 = vsub.s32 %v992, %v994
        %v996 = vrot.slane %v982, %v995
        %v997 = vcombine.low %v973, %v989
        %v998 = vcombine.high %v973, %v989
        %v1000 = vunpack.c.l.s4 1934713408
        %v1001 = vunpack.c.0.s8 %v1000
        %v1002 = vlaneseq
        %v1003 = vshrl.u32 %v1002, 7
        %v1004 = vsub.s32 %v1001, %v1003
        %v1005 = vrot.slane %v997, %v1004
        %v1007 = vunpack.c.l.s4 1934713408
        %v1008 = vunpack.c.0.s8 %v1007
        %v1009 = vlaneseq
        %v1010 = vshrl.u32 %v1009, 7
        %v1011 = vsub.s32 %v1008, %v1010
        %v1012 = vrot.slane %v998, %v1011
        %v1013 = vcombine.low %v980, %v996
        %v1014 = vcombine.high %v980, %v996
        %v1016 = vunpack.c.l.s4 1934713408
        %v1017 = vunpack.c.0.s8 %v1016
        %v1018 = vlaneseq
        %v1019 = vshrl.u32 %v1018, 7
        %v1020 = vsub.s32 %v1017, %v1019
        %v1021 = vrot.slane %v1013, %v1020
        %v1023 = vunpack.c.l.s4 1934713408
        %v1024 = vunpack.c.0.s8 %v1023
        %v1025 = vlaneseq
        %v1026 = vshrl.u32 %v1025, 7
        %v1027 = vsub.s32 %v1024, %v1026
        %v1028 = vrot.slane %v1014, %v1027
        %v1029 = vcombine.high %v1005, 0.0
        %v1030 = vcombine.high %v1012, 0.0
        %v1031 = vcombine.high %v1021, 0.0
        %v1032 = vcombine.high %v1028, 0.0
        %v1033 = vcombine.low %v1005, %v1012
        %v1035 = vunpack.c.l.s4 1983009808
        %v1036 = vunpack.c.0.s8 %v1035
        %v1037 = vlaneseq
        %v1038 = vshrl.u32 %v1037, 7
        %v1039 = vsub.s32 %v1036, %v1038
        %v1040 = vrot.slane %v1033, %v1039
        %v1041 = vcombine.low %v1029, %v1030
        %v1043 = vunpack.c.l.s4 1983009808
        %v1044 = vunpack.c.0.s8 %v1043
        %v1045 = vlaneseq
        %v1046 = vshrl.u32 %v1045, 7
        %v1047 = vsub.s32 %v1044, %v1046
        %v1048 = vrot.slane %v1041, %v1047
        %v1049 = vcombine.low %v1021, %v1028
        %v1051 = vunpack.c.l.s4 1983009808
        %v1052 = vunpack.c.0.s8 %v1051
        %v1053 = vlaneseq
        %v1054 = vshrl.u32 %v1053, 7
        %v1055 = vsub.s32 %v1052, %v1054
        %v1056 = vrot.slane %v1049, %v1055
        %v1057 = vcombine.low %v1031, %v1032
        %v1059 = vunpack.c.l.s4 1983009808
        %v1060 = vunpack.c.0.s8 %v1059
        %v1061 = vlaneseq
        %v1062 = vshrl.u32 %v1061, 7
        %v1063 = vsub.s32 %v1060, %v1062
        %v1064 = vrot.slane %v1057, %v1063
        %v1065 = vcombine.low %v1040, %v1048
        %v1066 = vcombine.high %v1040, %v1048
        %v1068 = vunpack.c.l.s4 1934713408
        %v1069 = vunpack.c.0.s8 %v1068
        %v1070 = vlaneseq
        %v1071 = vshrl.u32 %v1070, 7
        %v1072 = vsub.s32 %v1069, %v1071
        %v1073 = vrot.slane %v1065, %v1072
        %v1075 = vunpack.c.l.s4 1934713408
        %v1076 = vunpack.c.0.s8 %v1075
        %v1077 = vlaneseq
        %v1078 = vshrl.u32 %v1077, 7
        %v1079 = vsub.s32 %v1076, %v1078
        %v1080 = vrot.slane %v1066, %v1079
        %v1081 = vcombine.low %v1056, %v1064
        %v1082 = vcombine.high %v1056, %v1064
        %v1084 = vunpack.c.l.s4 1934713408
        %v1085 = vunpack.c.0.s8 %v1084
        %v1086 = vlaneseq
        %v1087 = vshrl.u32 %v1086, 7
        %v1088 = vsub.s32 %v1085, %v1087
        %v1089 = vrot.slane %v1081, %v1088
        %v1091 = vunpack.c.l.s4 1934713408
        %v1092 = vunpack.c.0.s8 %v1091
        %v1093 = vlaneseq
        %v1094 = vshrl.u32 %v1093, 7
        %v1095 = vsub.s32 %v1092, %v1094
        %v1096 = vrot.slane %v1082, %v1095
        %v1097 = vcombine.low %v1073, %v1089
        %v1098 = vcombine.high %v1073, %v1089
        %v1099 = vcombine.low %v1080, %v1096
        %v1100 = vcombine.high %v1080, %v1096
        %vm1101 = vcmask 64512
        %v1103 = vsel %vm1101, %v801, 0
        %v1106 = vsel %vm1101, %v949, 0
        %1108 = vmatprep.subr.mxu0 0.0
        %1109 = vmatpush1.xpose.msra.mxu0 %v1106
        %1110 = vmatprep.subr.mxu0 0.0
        %1111 = vmatpush1.xpose.msra.mxu0 0.0
        %1112 = vmatprep.subr.mxu0 0.0
        %1113 = vmatpush1.xpose.msra.mxu0 0.0
        %1114 = vmatprep.subr.mxu0 0.0
        %1115 = vmatpush1.xpose.msra.mxu0 0.0
        %1116 = vmatprep.subr.mxu0 0.0
        %1117 = vmatpush1.xpose.msra.mxu0 0.0
        %1118 = vmatprep.subr.mxu0 0.0
        %1119 = vmatpush1.xpose.msra.mxu0 0.0
        %1120 = vmatprep.subr.mxu0 0.0
        %1121 = vmatpush1.xpose.msra.mxu0 0.0
        %1122 = vmatprep.subr.mxu0 0.0
        %1123 = vmatpush1.xpose.msra.mxu0 0.0
        %1124 = vmatprep.subr.mxu0 0.0
        %1125 = vmatpush1.xpose.msra.mxu0 0.0
        %1126 = vmatprep.subr.mxu0 0.0
        %1127 = vmatpush1.xpose.msra.mxu0 0.0
        %1128 = vmatprep.subr.mxu0 0.0
        %1129 = vmatpush1.xpose.msra.mxu0 0.0
        %1130 = vmatprep.subr.mxu0 0.0
        %1131 = vmatpush1.xpose.msra.mxu0 0.0
        %1132 = vmatprep.subr.mxu0 0.0
        %1133 = vmatpush1.xpose.msra.mxu0 0.0
        %1134 = vmatprep.subr.mxu0 0.0
        %1135 = vmatpush1.xpose.msra.mxu0 0.0
        %1136 = vmatprep.subr.mxu0 0.0
        %1137 = vmatpush1.xpose.msra.mxu0 0.0
        %1138 = vmatprep.subr.mxu0 0.0
        %1139 = vmatpush1.xpose.msra.mxu0 0.0
        %1140 = vmatprep.subr.mxu0 0.0
        %1141 = vmatpush1.xpose.msra.mxu0 0.0
        %1142 = vmatprep.subr.mxu0 0.0
        %1143 = vmatpush1.xpose.msra.mxu0 0.0
        %1144 = vmatprep.subr.mxu0 0.0
        %1145 = vmatpush1.xpose.msra.mxu0 0.0
        %1146 = vmatprep.subr.mxu0 0.0
        %1147 = vmatpush1.xpose.msra.mxu0 0.0
        %1148 = vmatprep.subr.mxu0 0.0
        %1149 = vmatpush1.xpose.msra.mxu0 0.0
        %1150 = vmatprep.subr.mxu0 0.0
        %1151 = vmatpush1.xpose.msra.mxu0 0.0
        %1152 = vmatprep.subr.mxu0 0.0
        %1153 = vmatpush1.xpose.msra.mxu0 0.0
        %1154 = vmatprep.subr.mxu0 0.0
        %1155 = vmatpush1.xpose.msra.mxu0 0.0
        %1156 = vmatprep.subr.mxu0 0.0
        %1157 = vmatpush1.xpose.msra.mxu0 0.0
        %1158 = vmatprep.subr.mxu0 0.0
        %1159 = vmatpush1.xpose.msra.mxu0 0.0
        %1160 = vmatprep.subr.mxu0 0.0
        %1161 = vmatpush1.xpose.msra.mxu0 0.0
        %1162 = vmatprep.subr.mxu0 0.0
        %1163 = vmatpush1.xpose.msra.mxu0 0.0
        %1164 = vmatprep.subr.mxu0 0.0
        %1165 = vmatpush1.xpose.msra.mxu0 0.0
        %1166 = vmatprep.subr.mxu0 0.0
        %1167 = vmatpush1.xpose.msra.mxu0 0.0
        %1168 = vmatprep.subr.mxu0 0.0
        %1169 = vmatpush1.xpose.msra.mxu0 0.0
        %1170 = vmatprep.subr.mxu0 0.0
        %1171 = vmatpush1.xpose.msra.mxu0 0.0
        %1172 = vmatprep.mubr.f32.mxu0 0.0
        %1173 = vmatmul.mubr.f32.gmra.mrb[0].mxu0 %v1103
        %v1174 = vpop.f32.mrb[0].mxu0
        %v1175 = vadd.f32 0.0, %v1174
        %v1176 = vpop.f32.mrb[0].mxu0
        %1177 = vdwg.mxu0
        %v1179 = vsel %vm1101, %v802, 0
        %v1182 = vsel %vm1101, %v950, 0
        %1184 = vmatprep.subr.mxu0 0.0
        %1185 = vmatpush1.xpose.msra.mxu0 %v1182
        %1186 = vmatprep.subr.mxu0 0.0
        %1187 = vmatpush1.xpose.msra.mxu0 0.0
        %1188 = vmatprep.subr.mxu0 0.0
        %1189 = vmatpush1.xpose.msra.mxu0 0.0
        %1190 = vmatprep.subr.mxu0 0.0
        %1191 = vmatpush1.xpose.msra.mxu0 0.0
        %1192 = vmatprep.subr.mxu0 0.0
        %1193 = vmatpush1.xpose.msra.mxu0 0.0
        %1194 = vmatprep.subr.mxu0 0.0
        %1195 = vmatpush1.xpose.msra.mxu0 0.0
        %1196 = vmatprep.subr.mxu0 0.0
        %1197 = vmatpush1.xpose.msra.mxu0 0.0
        %1198 = vmatprep.subr.mxu0 0.0
        %1199 = vmatpush1.xpose.msra.mxu0 0.0
        %1200 = vmatprep.subr.mxu0 0.0
        %1201 = vmatpush1.xpose.msra.mxu0 0.0
        %1202 = vmatprep.subr.mxu0 0.0
        %1203 = vmatpush1.xpose.msra.mxu0 0.0
        %1204 = vmatprep.subr.mxu0 0.0
        %1205 = vmatpush1.xpose.msra.mxu0 0.0
        %1206 = vmatprep.subr.mxu0 0.0
        %1207 = vmatpush1.xpose.msra.mxu0 0.0
        %1208 = vmatprep.subr.mxu0 0.0
        %1209 = vmatpush1.xpose.msra.mxu0 0.0
        %1210 = vmatprep.subr.mxu0 0.0
        %1211 = vmatpush1.xpose.msra.mxu0 0.0
        %1212 = vmatprep.subr.mxu0 0.0
        %1213 = vmatpush1.xpose.msra.mxu0 0.0
        %1214 = vmatprep.subr.mxu0 0.0
        %1215 = vmatpush1.xpose.msra.mxu0 0.0
        %1216 = vmatprep.subr.mxu0 0.0
        %1217 = vmatpush1.xpose.msra.mxu0 0.0
        %1218 = vmatprep.subr.mxu0 0.0
        %1219 = vmatpush1.xpose.msra.mxu0 0.0
        %1220 = vmatprep.subr.mxu0 0.0
        %1221 = vmatpush1.xpose.msra.mxu0 0.0
        %1222 = vmatprep.subr.mxu0 0.0
        %1223 = vmatpush1.xpose.msra.mxu0 0.0
        %1224 = vmatprep.subr.mxu0 0.0
        %1225 = vmatpush1.xpose.msra.mxu0 0.0
        %1226 = vmatprep.subr.mxu0 0.0
        %1227 = vmatpush1.xpose.msra.mxu0 0.0
        %1228 = vmatprep.subr.mxu0 0.0
        %1229 = vmatpush1.xpose.msra.mxu0 0.0
        %1230 = vmatprep.subr.mxu0 0.0
        %1231 = vmatpush1.xpose.msra.mxu0 0.0
        %1232 = vmatprep.subr.mxu0 0.0
        %1233 = vmatpush1.xpose.msra.mxu0 0.0
        %1234 = vmatprep.subr.mxu0 0.0
        %1235 = vmatpush1.xpose.msra.mxu0 0.0
        %1236 = vmatprep.subr.mxu0 0.0
        %1237 = vmatpush1.xpose.msra.mxu0 0.0
        %1238 = vmatprep.subr.mxu0 0.0
        %1239 = vmatpush1.xpose.msra.mxu0 0.0
        %1240 = vmatprep.subr.mxu0 0.0
        %1241 = vmatpush1.xpose.msra.mxu0 0.0
        %1242 = vmatprep.subr.mxu0 0.0
        %1243 = vmatpush1.xpose.msra.mxu0 0.0
        %1244 = vmatprep.subr.mxu0 0.0
        %1245 = vmatpush1.xpose.msra.mxu0 0.0
        %1246 = vmatprep.subr.mxu0 0.0
        %1247 = vmatpush1.xpose.msra.mxu0 0.0
        %1248 = vmatprep.mubr.f32.mxu0 0.0
        %1249 = vmatmul.mubr.f32.gmra.mrb[0].mxu0 %v1179
        %v1250 = vpop.f32.mrb[0].mxu0
        %v1251 = vadd.f32 0.0, %v1250
        %v1252 = vpop.f32.mrb[0].mxu0
        %1253 = vdwg.mxu0
        %v1255 = vsel %vm1101, %v803, 0
        %v1258 = vsel %vm1101, %v951, 0
        %1260 = vmatprep.subr.mxu0 0.0
        %1261 = vmatpush1.xpose.msra.mxu0 %v1258
        %1262 = vmatprep.subr.mxu0 0.0
        %1263 = vmatpush1.xpose.msra.mxu0 0.0
        %1264 = vmatprep.subr.mxu0 0.0
        %1265 = vmatpush1.xpose.msra.mxu0 0.0
        %1266 = vmatprep.subr.mxu0 0.0
        %1267 = vmatpush1.xpose.msra.mxu0 0.0
        %1268 = vmatprep.subr.mxu0 0.0
        %1269 = vmatpush1.xpose.msra.mxu0 0.0
        %1270 = vmatprep.subr.mxu0 0.0
        %1271 = vmatpush1.xpose.msra.mxu0 0.0
        %1272 = vmatprep.subr.mxu0 0.0
        %1273 = vmatpush1.xpose.msra.mxu0 0.0
        %1274 = vmatprep.subr.mxu0 0.0
        %1275 = vmatpush1.xpose.msra.mxu0 0.0
        %1276 = vmatprep.subr.mxu0 0.0
        %1277 = vmatpush1.xpose.msra.mxu0 0.0
        %1278 = vmatprep.subr.mxu0 0.0
        %1279 = vmatpush1.xpose.msra.mxu0 0.0
        %1280 = vmatprep.subr.mxu0 0.0
        %1281 = vmatpush1.xpose.msra.mxu0 0.0
        %1282 = vmatprep.subr.mxu0 0.0
        %1283 = vmatpush1.xpose.msra.mxu0 0.0
        %1284 = vmatprep.subr.mxu0 0.0
        %1285 = vmatpush1.xpose.msra.mxu0 0.0
        %1286 = vmatprep.subr.mxu0 0.0
        %1287 = vmatpush1.xpose.msra.mxu0 0.0
        %1288 = vmatprep.subr.mxu0 0.0
        %1289 = vmatpush1.xpose.msra.mxu0 0.0
        %1290 = vmatprep.subr.mxu0 0.0
        %1291 = vmatpush1.xpose.msra.mxu0 0.0
        %1292 = vmatprep.subr.mxu0 0.0
        %1293 = vmatpush1.xpose.msra.mxu0 0.0
        %1294 = vmatprep.subr.mxu0 0.0
        %1295 = vmatpush1.xpose.msra.mxu0 0.0
        %1296 = vmatprep.subr.mxu0 0.0
        %1297 = vmatpush1.xpose.msra.mxu0 0.0
        %1298 = vmatprep.subr.mxu0 0.0
        %1299 = vmatpush1.xpose.msra.mxu0 0.0
        %1300 = vmatprep.subr.mxu0 0.0
        %1301 = vmatpush1.xpose.msra.mxu0 0.0
        %1302 = vmatprep.subr.mxu0 0.0
        %1303 = vmatpush1.xpose.msra.mxu0 0.0
        %1304 = vmatprep.subr.mxu0 0.0
        %1305 = vmatpush1.xpose.msra.mxu0 0.0
        %1306 = vmatprep.subr.mxu0 0.0
        %1307 = vmatpush1.xpose.msra.mxu0 0.0
        %1308 = vmatprep.subr.mxu0 0.0
        %1309 = vmatpush1.xpose.msra.mxu0 0.0
        %1310 = vmatprep.subr.mxu0 0.0
        %1311 = vmatpush1.xpose.msra.mxu0 0.0
        %1312 = vmatprep.subr.mxu0 0.0
        %1313 = vmatpush1.xpose.msra.mxu0 0.0
        %1314 = vmatprep.subr.mxu0 0.0
        %1315 = vmatpush1.xpose.msra.mxu0 0.0
        %1316 = vmatprep.subr.mxu0 0.0
        %1317 = vmatpush1.xpose.msra.mxu0 0.0
        %1318 = vmatprep.subr.mxu0 0.0
        %1319 = vmatpush1.xpose.msra.mxu0 0.0
        %1320 = vmatprep.subr.mxu0 0.0
        %1321 = vmatpush1.xpose.msra.mxu0 0.0
        %1322 = vmatprep.subr.mxu0 0.0
        %1323 = vmatpush1.xpose.msra.mxu0 0.0
        %1324 = vmatprep.mubr.f32.mxu0 0.0
        %1325 = vmatmul.mubr.f32.gmra.mrb[0].mxu0 %v1255
        %v1326 = vpop.f32.mrb[0].mxu0
        %v1327 = vadd.f32 0.0, %v1326
        %v1328 = vpop.f32.mrb[0].mxu0
        %1329 = vdwg.mxu0
        %v1331 = vsel %vm1101, %v804, 0
        %v1334 = vsel %vm1101, %v952, 0
        %1336 = vmatprep.subr.mxu0 0.0
        %1337 = vmatpush1.xpose.msra.mxu0 %v1334
        %1338 = vmatprep.subr.mxu0 0.0
        %1339 = vmatpush1.xpose.msra.mxu0 0.0
        %1340 = vmatprep.subr.mxu0 0.0
        %1341 = vmatpush1.xpose.msra.mxu0 0.0
        %1342 = vmatprep.subr.mxu0 0.0
        %1343 = vmatpush1.xpose.msra.mxu0 0.0
        %1344 = vmatprep.subr.mxu0 0.0
        %1345 = vmatpush1.xpose.msra.mxu0 0.0
        %1346 = vmatprep.subr.mxu0 0.0
        %1347 = vmatpush1.xpose.msra.mxu0 0.0
        %1348 = vmatprep.subr.mxu0 0.0
        %1349 = vmatpush1.xpose.msra.mxu0 0.0
        %1350 = vmatprep.subr.mxu0 0.0
        %1351 = vmatpush1.xpose.msra.mxu0 0.0
        %1352 = vmatprep.subr.mxu0 0.0
        %1353 = vmatpush1.xpose.msra.mxu0 0.0
        %1354 = vmatprep.subr.mxu0 0.0
        %1355 = vmatpush1.xpose.msra.mxu0 0.0
        %1356 = vmatprep.subr.mxu0 0.0
        %1357 = vmatpush1.xpose.msra.mxu0 0.0
        %1358 = vmatprep.subr.mxu0 0.0
        %1359 = vmatpush1.xpose.msra.mxu0 0.0
        %1360 = vmatprep.subr.mxu0 0.0
        %1361 = vmatpush1.xpose.msra.mxu0 0.0
        %1362 = vmatprep.subr.mxu0 0.0
        %1363 = vmatpush1.xpose.msra.mxu0 0.0
        %1364 = vmatprep.subr.mxu0 0.0
        %1365 = vmatpush1.xpose.msra.mxu0 0.0
        %1366 = vmatprep.subr.mxu0 0.0
        %1367 = vmatpush1.xpose.msra.mxu0 0.0
        %1368 = vmatprep.subr.mxu0 0.0
        %1369 = vmatpush1.xpose.msra.mxu0 0.0
        %1370 = vmatprep.subr.mxu0 0.0
        %1371 = vmatpush1.xpose.msra.mxu0 0.0
        %1372 = vmatprep.subr.mxu0 0.0
        %1373 = vmatpush1.xpose.msra.mxu0 0.0
        %1374 = vmatprep.subr.mxu0 0.0
        %1375 = vmatpush1.xpose.msra.mxu0 0.0
        %1376 = vmatprep.subr.mxu0 0.0
        %1377 = vmatpush1.xpose.msra.mxu0 0.0
        %1378 = vmatprep.subr.mxu0 0.0
        %1379 = vmatpush1.xpose.msra.mxu0 0.0
        %1380 = vmatprep.subr.mxu0 0.0
        %1381 = vmatpush1.xpose.msra.mxu0 0.0
        %1382 = vmatprep.subr.mxu0 0.0
        %1383 = vmatpush1.xpose.msra.mxu0 0.0
        %1384 = vmatprep.subr.mxu0 0.0
        %1385 = vmatpush1.xpose.msra.mxu0 0.0
        %1386 = vmatprep.subr.mxu0 0.0
        %1387 = vmatpush1.xpose.msra.mxu0 0.0
        %1388 = vmatprep.subr.mxu0 0.0
        %1389 = vmatpush1.xpose.msra.mxu0 0.0
        %1390 = vmatprep.subr.mxu0 0.0
        %1391 = vmatpush1.xpose.msra.mxu0 0.0
        %1392 = vmatprep.subr.mxu0 0.0
        %1393 = vmatpush1.xpose.msra.mxu0 0.0
        %1394 = vmatprep.subr.mxu0 0.0
        %1395 = vmatpush1.xpose.msra.mxu0 0.0
        %1396 = vmatprep.subr.mxu0 0.0
        %1397 = vmatpush1.xpose.msra.mxu0 0.0
        %1398 = vmatprep.subr.mxu0 0.0
        %1399 = vmatpush1.xpose.msra.mxu0 0.0
        %1400 = vmatprep.mubr.f32.mxu0 0.0
        %1401 = vmatmul.mubr.f32.gmra.mrb[0].mxu0 %v1331
        %v1402 = vpop.f32.mrb[0].mxu0
        %v1403 = vadd.f32 0.0, %v1402
        %v1404 = vpop.f32.mrb[0].mxu0
        %1405 = vdwg.mxu0
        %v1406 = vsel %vm1101, %v1175, -inf
        %1407 = vmax.xlane.f32.xlu0 %v1406
        %v1408 = vpop.xlane.xlu0 %1407
        %v1409 = vsel %vm1101, %v1251, -inf
        %1410 = vmax.xlane.f32.xlu0 %v1409
        %v1411 = vpop.xlane.xlu0 %1410
        %v1412 = vsel %vm1101, %v1327, -inf
        %1413 = vmax.xlane.f32.xlu0 %v1412
        %v1414 = vpop.xlane.xlu0 %1413
        %v1415 = vsel %vm1101, %v1403, -inf
        %1416 = vmax.xlane.f32.xlu0 %v1415
        %v1417 = vpop.xlane.xlu0 %1416
        %v1418 = vsub.f32 %v1175, %v1408
        %v1419 = vsub.f32 %v1251, %v1411
        %v1420 = vsub.f32 %v1327, %v1414
        %v1421 = vsub.f32 %v1403, %v1417
        %v1422 = vmul.f32 %v1418, 1.442695
        %v1423 = vpow.pop %v1422
        %v1424 = vmul.f32 %v1419, 1.442695
        %v1425 = vpow.pop %v1424
        %v1426 = vmul.f32 %v1420, 1.442695
        %v1427 = vpow.pop %v1426
        %v1428 = vmul.f32 %v1421, 1.442695
        %v1429 = vpow.pop %v1428
        %v1430 = vsel %vm1101, %v1423, 0.0
        %1431 = vadd.xlane.f32.xlu0 %v1430
        %v1432 = vpop.xlane.xlu0 %1431
        %v1433 = vsel %vm1101, %v1425, 0.0
        %1434 = vadd.xlane.f32.xlu0 %v1433
        %v1435 = vpop.xlane.xlu0 %1434
        %v1436 = vsel %vm1101, %v1427, 0.0
        %1437 = vadd.xlane.f32.xlu0 %v1436
        %v1438 = vpop.xlane.xlu0 %1437
        %v1439 = vsel %vm1101, %v1429, 0.0
        %1440 = vadd.xlane.f32.xlu0 %v1439
        %v1441 = vpop.xlane.xlu0 %1440
        %v1442 = vrcp.pop %v1432
        %v1443 = vmul.f32 %v1423, %v1442
        %v1444 = vrcp.pop %v1435
        %v1445 = vmul.f32 %v1425, %v1444
        %v1446 = vrcp.pop %v1438
        %v1447 = vmul.f32 %v1427, %v1446
        %v1448 = vrcp.pop %v1441
        %v1449 = vmul.f32 %v1429, %v1448
        %v1451 = vsel %vm1101, %v1443, 0
        %1453 = vmatprep.subr.mxu0 0.0
        %1454 = vmatpush1.msra.mxu0 %v1097
        %1455 = vmatprep.subr.mxu0 0.0
        %1456 = vmatpush1.msra.mxu0 0.0
        %1457 = vmatprep.subr.mxu0 0.0
        %1458 = vmatpush1.msra.mxu0 0.0
        %1459 = vmatprep.subr.mxu0 0.0
        %1460 = vmatpush1.msra.mxu0 0.0
        %1461 = vmatprep.subr.mxu0 0.0
        %1462 = vmatpush1.msra.mxu0 0.0
        %1463 = vmatprep.subr.mxu0 0.0
        %1464 = vmatpush1.msra.mxu0 0.0
        %1465 = vmatprep.subr.mxu0 0.0
        %1466 = vmatpush1.msra.mxu0 0.0
        %1467 = vmatprep.subr.mxu0 0.0
        %1468 = vmatpush1.msra.mxu0 0.0
        %1469 = vmatprep.subr.mxu0 0.0
        %1470 = vmatpush1.msra.mxu0 0.0
        %1471 = vmatprep.subr.mxu0 0.0
        %1472 = vmatpush1.msra.mxu0 0.0
        %1473 = vmatprep.subr.mxu0 0.0
        %1474 = vmatpush1.msra.mxu0 0.0
        %1475 = vmatprep.subr.mxu0 0.0
        %1476 = vmatpush1.msra.mxu0 0.0
        %1477 = vmatprep.subr.mxu0 0.0
        %1478 = vmatpush1.msra.mxu0 0.0
        %1479 = vmatprep.subr.mxu0 0.0
        %1480 = vmatpush1.msra.mxu0 0.0
        %1481 = vmatprep.subr.mxu0 0.0
        %1482 = vmatpush1.msra.mxu0 0.0
        %1483 = vmatprep.subr.mxu0 0.0
        %1484 = vmatpush1.msra.mxu0 0.0
        %1485 = vmatprep.subr.mxu0 0.0
        %1486 = vmatpush1.msra.mxu0 0.0
        %1487 = vmatprep.subr.mxu0 0.0
        %1488 = vmatpush1.msra.mxu0 0.0
        %1489 = vmatprep.subr.mxu0 0.0
        %1490 = vmatpush1.msra.mxu0 0.0
        %1491 = vmatprep.subr.mxu0 0.0
        %1492 = vmatpush1.msra.mxu0 0.0
        %1493 = vmatprep.subr.mxu0 0.0
        %1494 = vmatpush1.msra.mxu0 0.0
        %1495 = vmatprep.subr.mxu0 0.0
        %1496 = vmatpush1.msra.mxu0 0.0
        %1497 = vmatprep.subr.mxu0 0.0
        %1498 = vmatpush1.msra.mxu0 0.0
        %1499 = vmatprep.subr.mxu0 0.0
        %1500 = vmatpush1.msra.mxu0 0.0
        %1501 = vmatprep.subr.mxu0 0.0
        %1502 = vmatpush1.msra.mxu0 0.0
        %1503 = vmatprep.subr.mxu0 0.0
        %1504 = vmatpush1.msra.mxu0 0.0
        %1505 = vmatprep.subr.mxu0 0.0
        %1506 = vmatpush1.msra.mxu0 0.0
        %1507 = vmatprep.subr.mxu0 0.0
        %1508 = vmatpush1.msra.mxu0 0.0
        %1509 = vmatprep.subr.mxu0 0.0
        %1510 = vmatpush1.msra.mxu0 0.0
        %1511 = vmatprep.subr.mxu0 0.0
        %1512 = vmatpush1.msra.mxu0 0.0
        %1513 = vmatprep.subr.mxu0 0.0
        %1514 = vmatpush1.msra.mxu0 0.0
        %1515 = vmatprep.subr.mxu0 0.0
        %1516 = vmatpush1.msra.mxu0 0.0
        %1517 = vmatprep.mubr.f32.mxu0 0.0
        %1518 = vmatmul.mubr.f32.gmra.mrb[0].mxu0 %v1451
        %v1519 = vpop.f32.mrb[0].mxu0
        %v1520 = vadd.f32 0.0, %v1519
        %v1521 = vpop.f32.mrb[0].mxu0
        %1522 = vdwg.mxu0
        %v1524 = vsel %vm1101, %v1445, 0
        %1526 = vmatprep.subr.mxu0 0.0
        %1527 = vmatpush1.msra.mxu0 %v1098
        %1528 = vmatprep.subr.mxu0 0.0
        %1529 = vmatpush1.msra.mxu0 0.0
        %1530 = vmatprep.subr.mxu0 0.0
        %1531 = vmatpush1.msra.mxu0 0.0
        %1532 = vmatprep.subr.mxu0 0.0
        %1533 = vmatpush1.msra.mxu0 0.0
        %1534 = vmatprep.subr.mxu0 0.0
        %1535 = vmatpush1.msra.mxu0 0.0
        %1536 = vmatprep.subr.mxu0 0.0
        %1537 = vmatpush1.msra.mxu0 0.0
        %1538 = vmatprep.subr.mxu0 0.0
        %1539 = vmatpush1.msra.mxu0 0.0
        %1540 = vmatprep.subr.mxu0 0.0
        %1541 = vmatpush1.msra.mxu0 0.0
        %1542 = vmatprep.subr.mxu0 0.0
        %1543 = vmatpush1.msra.mxu0 0.0
        %1544 = vmatprep.subr.mxu0 0.0
        %1545 = vmatpush1.msra.mxu0 0.0
        %1546 = vmatprep.subr.mxu0 0.0
        %1547 = vmatpush1.msra.mxu0 0.0
        %1548 = vmatprep.subr.mxu0 0.0
        %1549 = vmatpush1.msra.mxu0 0.0
        %1550 = vmatprep.subr.mxu0 0.0
        %1551 = vmatpush1.msra.mxu0 0.0
        %1552 = vmatprep.subr.mxu0 0.0
        %1553 = vmatpush1.msra.mxu0 0.0
        %1554 = vmatprep.subr.mxu0 0.0
        %1555 = vmatpush1.msra.mxu0 0.0
        %1556 = vmatprep.subr.mxu0 0.0
        %1557 = vmatpush1.msra.mxu0 0.0
        %1558 = vmatprep.subr.mxu0 0.0
        %1559 = vmatpush1.msra.mxu0 0.0
        %1560 = vmatprep.subr.mxu0 0.0
        %1561 = vmatpush1.msra.mxu0 0.0
        %1562 = vmatprep.subr.mxu0 0.0
        %1563 = vmatpush1.msra.mxu0 0.0
        %1564 = vmatprep.subr.mxu0 0.0
        %1565 = vmatpush1.msra.mxu0 0.0
        %1566 = vmatprep.subr.mxu0 0.0
        %1567 = vmatpush1.msra.mxu0 0.0
        %1568 = vmatprep.subr.mxu0 0.0
        %1569 = vmatpush1.msra.mxu0 0.0
        %1570 = vmatprep.subr.mxu0 0.0
        %1571 = vmatpush1.msra.mxu0 0.0
        %1572 = vmatprep.subr.mxu0 0.0
        %1573 = vmatpush1.msra.mxu0 0.0
        %1574 = vmatprep.subr.mxu0 0.0
        %1575 = vmatpush1.msra.mxu0 0.0
        %1576 = vmatprep.subr.mxu0 0.0
        %1577 = vmatpush1.msra.mxu0 0.0
        %1578 = vmatprep.subr.mxu0 0.0
        %1579 = vmatpush1.msra.mxu0 0.0
        %1580 = vmatprep.subr.mxu0 0.0
        %1581 = vmatpush1.msra.mxu0 0.0
        %1582 = vmatprep.subr.mxu0 0.0
        %1583 = vmatpush1.msra.mxu0 0.0
        %1584 = vmatprep.subr.mxu0 0.0
        %1585 = vmatpush1.msra.mxu0 0.0
        %1586 = vmatprep.subr.mxu0 0.0
        %1587 = vmatpush1.msra.mxu0 0.0
        %1588 = vmatprep.subr.mxu0 0.0
        %1589 = vmatpush1.msra.mxu0 0.0
        %1590 = vmatprep.mubr.f32.mxu0 0.0
        %1591 = vmatmul.mubr.f32.gmra.mrb[0].mxu0 %v1524
        %v1592 = vpop.f32.mrb[0].mxu0
        %v1593 = vadd.f32 0.0, %v1592
        %v1594 = vpop.f32.mrb[0].mxu0
        %1595 = vdwg.mxu0
        %v1597 = vsel %vm1101, %v1447, 0
        %1599 = vmatprep.subr.mxu0 0.0
        %1600 = vmatpush1.msra.mxu0 %v1099
        %1601 = vmatprep.subr.mxu0 0.0
        %1602 = vmatpush1.msra.mxu0 0.0
        %1603 = vmatprep.subr.mxu0 0.0
        %1604 = vmatpush1.msra.mxu0 0.0
        %1605 = vmatprep.subr.mxu0 0.0
        %1606 = vmatpush1.msra.mxu0 0.0
        %1607 = vmatprep.subr.mxu0 0.0
        %1608 = vmatpush1.msra.mxu0 0.0
        %1609 = vmatprep.subr.mxu0 0.0
        %1610 = vmatpush1.msra.mxu0 0.0
        %1611 = vmatprep.subr.mxu0 0.0
        %1612 = vmatpush1.msra.mxu0 0.0
        %1613 = vmatprep.subr.mxu0 0.0
        %1614 = vmatpush1.msra.mxu0 0.0
        %1615 = vmatprep.subr.mxu0 0.0
        %1616 = vmatpush1.msra.mxu0 0.0
        %1617 = vmatprep.subr.mxu0 0.0
        %1618 = vmatpush1.msra.mxu0 0.0
        %1619 = vmatprep.subr.mxu0 0.0
        %1620 = vmatpush1.msra.mxu0 0.0
        %1621 = vmatprep.subr.mxu0 0.0
        %1622 = vmatpush1.msra.mxu0 0.0
        %1623 = vmatprep.subr.mxu0 0.0
        %1624 = vmatpush1.msra.mxu0 0.0
        %1625 = vmatprep.subr.mxu0 0.0
        %1626 = vmatpush1.msra.mxu0 0.0
        %1627 = vmatprep.subr.mxu0 0.0
        %1628 = vmatpush1.msra.mxu0 0.0
        %1629 = vmatprep.subr.mxu0 0.0
        %1630 = vmatpush1.msra.mxu0 0.0
        %1631 = vmatprep.subr.mxu0 0.0
        %1632 = vmatpush1.msra.mxu0 0.0
        %1633 = vmatprep.subr.mxu0 0.0
        %1634 = vmatpush1.msra.mxu0 0.0
        %1635 = vmatprep.subr.mxu0 0.0
        %1636 = vmatpush1.msra.mxu0 0.0
        %1637 = vmatprep.subr.mxu0 0.0
        %1638 = vmatpush1.msra.mxu0 0.0
        %1639 = vmatprep.subr.mxu0 0.0
        %1640 = vmatpush1.msra.mxu0 0.0
        %1641 = vmatprep.subr.mxu0 0.0
        %1642 = vmatpush1.msra.mxu0 0.0
        %1643 = vmatprep.subr.mxu0 0.0
        %1644 = vmatpush1.msra.mxu0 0.0
        %1645 = vmatprep.subr.mxu0 0.0
        %1646 = vmatpush1.msra.mxu0 0.0
        %1647 = vmatprep.subr.mxu0 0.0
        %1648 = vmatpush1.msra.mxu0 0.0
        %1649 = vmatprep.subr.mxu0 0.0
        %1650 = vmatpush1.msra.mxu0 0.0
        %1651 = vmatprep.subr.mxu0 0.0
        %1652 = vmatpush1.msra.mxu0 0.0
        %1653 = vmatprep.subr.mxu0 0.0
        %1654 = vmatpush1.msra.mxu0 0.0
        %1655 = vmatprep.subr.mxu0 0.0
        %1656 = vmatpush1.msra.mxu0 0.0
        %1657 = vmatprep.subr.mxu0 0.0
        %1658 = vmatpush1.msra.mxu0 0.0
        %1659 = vmatprep.subr.mxu0 0.0
        %1660 = vmatpush1.msra.mxu0 0.0
        %1661 = vmatprep.subr.mxu0 0.0
        %1662 = vmatpush1.msra.mxu0 0.0
        %1663 = vmatprep.mubr.f32.mxu0 0.0
        %1664 = vmatmul.mubr.f32.gmra.mrb[0].mxu0 %v1597
        %v1665 = vpop.f32.mrb[0].mxu0
        %v1666 = vadd.f32 0.0, %v1665
        %v1667 = vpop.f32.mrb[0].mxu0
        %1668 = vdwg.mxu0
        %v1670 = vsel %vm1101, %v1449, 0
        %1672 = vmatprep.subr.mxu0 0.0
        %1673 = vmatpush1.msra.mxu0 %v1100
        %1674 = vmatprep.subr.mxu0 0.0
        %1675 = vmatpush1.msra.mxu0 0.0
        %1676 = vmatprep.subr.mxu0 0.0
        %1677 = vmatpush1.msra.mxu0 0.0
        %1678 = vmatprep.subr.mxu0 0.0
        %1679 = vmatpush1.msra.mxu0 0.0
        %1680 = vmatprep.subr.mxu0 0.0
        %1681 = vmatpush1.msra.mxu0 0.0
        %1682 = vmatprep.subr.mxu0 0.0
        %1683 = vmatpush1.msra.mxu0 0.0
        %1684 = vmatprep.subr.mxu0 0.0
        %1685 = vmatpush1.msra.mxu0 0.0
        %1686 = vmatprep.subr.mxu0 0.0
        %1687 = vmatpush1.msra.mxu0 0.0
        %1688 = vmatprep.subr.mxu0 0.0
        %1689 = vmatpush1.msra.mxu0 0.0
        %1690 = vmatprep.subr.mxu0 0.0
        %1691 = vmatpush1.msra.mxu0 0.0
        %1692 = vmatprep.subr.mxu0 0.0
        %1693 = vmatpush1.msra.mxu0 0.0
        %1694 = vmatprep.subr.mxu0 0.0
        %1695 = vmatpush1.msra.mxu0 0.0
        %1696 = vmatprep.subr.mxu0 0.0
        %1697 = vmatpush1.msra.mxu0 0.0
        %1698 = vmatprep.subr.mxu0 0.0
        %1699 = vmatpush1.msra.mxu0 0.0
        %1700 = vmatprep.subr.mxu0 0.0
        %1701 = vmatpush1.msra.mxu0 0.0
        %1702 = vmatprep.subr.mxu0 0.0
        %1703 = vmatpush1.msra.mxu0 0.0
        %1704 = vmatprep.subr.mxu0 0.0
        %1705 = vmatpush1.msra.mxu0 0.0
        %1706 = vmatprep.subr.mxu0 0.0
        %1707 = vmatpush1.msra.mxu0 0.0
        %1708 = vmatprep.subr.mxu0 0.0
        %1709 = vmatpush1.msra.mxu0 0.0
        %1710 = vmatprep.subr.mxu0 0.0
        %1711 = vmatpush1.msra.mxu0 0.0
        %1712 = vmatprep.subr.mxu0 0.0
        %1713 = vmatpush1.msra.mxu0 0.0
        %1714 = vmatprep.subr.mxu0 0.0
        %1715 = vmatpush1.msra.mxu0 0.0
        %1716 = vmatprep.subr.mxu0 0.0
        %1717 = vmatpush1.msra.mxu0 0.0
        %1718 = vmatprep.subr.mxu0 0.0
        %1719 = vmatpush1.msra.mxu0 0.0
        %1720 = vmatprep.subr.mxu0 0.0
        %1721 = vmatpush1.msra.mxu0 0.0
        %1722 = vmatprep.subr.mxu0 0.0
        %1723 = vmatpush1.msra.mxu0 0.0
        %1724 = vmatprep.subr.mxu0 0.0
        %1725 = vmatpush1.msra.mxu0 0.0
        %1726 = vmatprep.subr.mxu0 0.0
        %1727 = vmatpush1.msra.mxu0 0.0
        %1728 = vmatprep.subr.mxu0 0.0
        %1729 = vmatpush1.msra.mxu0 0.0
        %1730 = vmatprep.subr.mxu0 0.0
        %1731 = vmatpush1.msra.mxu0 0.0
        %1732 = vmatprep.subr.mxu0 0.0
        %1733 = vmatpush1.msra.mxu0 0.0
        %1734 = vmatprep.subr.mxu0 0.0
        %1735 = vmatpush1.msra.mxu0 0.0
        %1736 = vmatprep.mubr.f32.mxu0 0.0
        %1737 = vmatmul.mubr.f32.gmra.mrb[0].mxu0 %v1670
        %v1738 = vpop.f32.mrb[0].mxu0
        %v1739 = vadd.f32 0.0, %v1738
        %v1740 = vpop.f32.mrb[0].mxu0
        %1741 = vdwg.mxu0
        %v1742 = vcombine.low %v1520, %v1666
        %v1743 = vcombine.high %v1520, %v1666
        %v1745 = vunpack.c.l.s4 1983009808
        %v1746 = vunpack.c.0.s8 %v1745
        %v1747 = vlaneseq
        %v1748 = vshrl.u32 %v1747, 7
        %v1749 = vsub.s32 %v1746, %v1748
        %v1750 = vrot.slane %v1742, %v1749
        %v1752 = vunpack.c.l.s4 1983009808
        %v1753 = vunpack.c.0.s8 %v1752
        %v1754 = vlaneseq
        %v1755 = vshrl.u32 %v1754, 7
        %v1756 = vsub.s32 %v1753, %v1755
        %v1757 = vrot.slane %v1743, %v1756
        %v1758 = vcombine.low %v1593, %v1739
        %v1759 = vcombine.high %v1593, %v1739
        %v1761 = vunpack.c.l.s4 1983009808
        %v1762 = vunpack.c.0.s8 %v1761
        %v1763 = vlaneseq
        %v1764 = vshrl.u32 %v1763, 7
        %v1765 = vsub.s32 %v1762, %v1764
        %v1766 = vrot.slane %v1758, %v1765
        %v1768 = vunpack.c.l.s4 1983009808
        %v1769 = vunpack.c.0.s8 %v1768
        %v1770 = vlaneseq
        %v1771 = vshrl.u32 %v1770, 7
        %v1772 = vsub.s32 %v1769, %v1771
        %v1773 = vrot.slane %v1759, %v1772
        %v1774 = vcombine.low %v1750, %v1766
        %v1775 = vcombine.high %v1750, %v1766
        %v1777 = vunpack.c.l.s4 1934713408
        %v1778 = vunpack.c.0.s8 %v1777
        %v1779 = vlaneseq
        %v1780 = vshrl.u32 %v1779, 7
        %v1781 = vsub.s32 %v1778, %v1780
        %v1782 = vrot.slane %v1774, %v1781
        %v1784 = vunpack.c.l.s4 1934713408
        %v1785 = vunpack.c.0.s8 %v1784
        %v1786 = vlaneseq
        %v1787 = vshrl.u32 %v1786, 7
        %v1788 = vsub.s32 %v1785, %v1787
        %v1789 = vrot.slane %v1775, %v1788
        %v1790 = vcombine.low %v1757, %v1773
        %v1791 = vcombine.high %v1757, %v1773
        %v1793 = vunpack.c.l.s4 1934713408
        %v1794 = vunpack.c.0.s8 %v1793
        %v1795 = vlaneseq
        %v1796 = vshrl.u32 %v1795, 7
        %v1797 = vsub.s32 %v1794, %v1796
        %v1798 = vrot.slane %v1790, %v1797
        %v1800 = vunpack.c.l.s4 1934713408
        %v1801 = vunpack.c.0.s8 %v1800
        %v1802 = vlaneseq
        %v1803 = vshrl.u32 %v1802, 7
        %v1804 = vsub.s32 %v1801, %v1803
        %v1805 = vrot.slane %v1791, %v1804
        %v1806 = vcombine.high %v1782, 0.0
        %v1807 = vcombine.high %v1789, 0.0
        %v1808 = vcombine.high %v1798, 0.0
        %v1809 = vcombine.high %v1805, 0.0
        %v1810 = vcombine.low %v1782, %v1789
        %v1812 = vunpack.c.l.s4 1983009808
        %v1813 = vunpack.c.0.s8 %v1812
        %v1814 = vlaneseq
        %v1815 = vshrl.u32 %v1814, 7
        %v1816 = vsub.s32 %v1813, %v1815
        %v1817 = vrot.slane %v1810, %v1816
        %v1818 = vcombine.low %v1806, %v1807
        %v1820 = vunpack.c.l.s4 1983009808
        %v1821 = vunpack.c.0.s8 %v1820
        %v1822 = vlaneseq
        %v1823 = vshrl.u32 %v1822, 7
        %v1824 = vsub.s32 %v1821, %v1823
        %v1825 = vrot.slane %v1818, %v1824
        %v1826 = vcombine.low %v1798, %v1805
        %v1828 = vunpack.c.l.s4 1983009808
        %v1829 = vunpack.c.0.s8 %v1828
        %v1830 = vlaneseq
        %v1831 = vshrl.u32 %v1830, 7
        %v1832 = vsub.s32 %v1829, %v1831
        %v1833 = vrot.slane %v1826, %v1832
        %v1834 = vcombine.low %v1808, %v1809
        %v1836 = vunpack.c.l.s4 1983009808
        %v1837 = vunpack.c.0.s8 %v1836
        %v1838 = vlaneseq
        %v1839 = vshrl.u32 %v1838, 7
        %v1840 = vsub.s32 %v1837, %v1839
        %v1841 = vrot.slane %v1834, %v1840
        %v1842 = vcombine.low %v1817, %v1825
        %v1843 = vcombine.high %v1817, %v1825
        %v1845 = vunpack.c.l.s4 1934713408
        %v1846 = vunpack.c.0.s8 %v1845
        %v1847 = vlaneseq
        %v1848 = vshrl.u32 %v1847, 7
        %v1849 = vsub.s32 %v1846, %v1848
        %v1850 = vrot.slane %v1842, %v1849
        %v1852 = vunpack.c.l.s4 1934713408
        %v1853 = vunpack.c.0.s8 %v1852
        %v1854 = vlaneseq
        %v1855 = vshrl.u32 %v1854, 7
        %v1856 = vsub.s32 %v1853, %v1855
        %v1857 = vrot.slane %v1843, %v1856
        %v1858 = vcombine.low %v1833, %v1841
        %v1859 = vcombine.high %v1833, %v1841
        %v1861 = vunpack.c.l.s4 1934713408
        %v1862 = vunpack.c.0.s8 %v1861
        %v1863 = vlaneseq
        %v1864 = vshrl.u32 %v1863, 7
        %v1865 = vsub.s32 %v1862, %v1864
        %v1866 = vrot.slane %v1858, %v1865
        %v1868 = vunpack.c.l.s4 1934713408
        %v1869 = vunpack.c.0.s8 %v1868
        %v1870 = vlaneseq
        %v1871 = vshrl.u32 %v1870, 7
        %v1872 = vsub.s32 %v1869, %v1871
        %v1873 = vrot.slane %v1859, %v1872
        %v1874 = vcombine.low %v1850, %v1866
        %v1875 = vcombine.high %v1850, %v1866
        %v1876 = vcombine.low %v1857, %v1873
        %v1877 = vcombine.high %v1857, %v1873
        %1879 = vrot.lane.b32.xlu0 %v1875, 8
        %v1880 = vpop.permute.xlu0 %1879
        %1883 = vrot.lane.b32.xlu0 %v1876, 16
        %v1884 = vpop.permute.xlu0 %1883
        %1887 = vrot.lane.b32.xlu0 %v1877, 24
        %v1888 = vpop.permute.xlu0 %1887
        %v1890 = vsel %vm1101, %v1874, %v1880
        %v1891 = vsel %vm500, %v1890, %v1884
        %vm1892 = vcmask 195584
        %v1893 = vsel %vm1892, %v1891, %v1888
        %v1894 = vld [vmem:[%s5] sm:$0xff]
        %v1895 = vld [vmem:[%s5 + $0x8] sm:$0xff]
        %v1896 = vld [vmem:[%s5 + $0x10] sm:$0xff]
        %v1897 = vld [vmem:[%s5 + $0x18] sm:$0xff]
        %v1898 = vld [vmem:[%s6] sm:$0x1]
        %v1900 = vlaneseq
        %v1901 = vshrl.u32 %v1900, 7
        %v1902 = vsub.s32 0, %v1901
        %v1903 = vrot.slane %v1898, %v1902
        %v1906 = vsel %vm585, %v1893, 0
        %1908 = vmatprep.subr.mxu0 0.0
        %1909 = vmatpush1.msra.mxu0 %v1894
        %1910 = vmatprep.subr.mxu0 0.0
        %1911 = vmatpush1.msra.mxu0 %v1895
        %1912 = vmatprep.subr.mxu0 0.0
        %1913 = vmatpush1.msra.mxu0 %v1896
        %1914 = vmatprep.subr.mxu0 0.0
        %1915 = vmatpush1.msra.mxu0 %v1897
        %1916 = vmatprep.subr.mxu0 0.0
        %1917 = vmatpush1.msra.mxu0 0.0
        %1918 = vmatprep.subr.mxu0 0.0
        %1919 = vmatpush1.msra.mxu0 0.0
        %1920 = vmatprep.subr.mxu0 0.0
        %1921 = vmatpush1.msra.mxu0 0.0
        %1922 = vmatprep.subr.mxu0 0.0
        %1923 = vmatpush1.msra.mxu0 0.0
        %1924 = vmatprep.subr.mxu0 0.0
        %1925 = vmatpush1.msra.mxu0 0.0
        %1926 = vmatprep.subr.mxu0 0.0
        %1927 = vmatpush1.msra.mxu0 0.0
        %1928 = vmatprep.subr.mxu0 0.0
        %1929 = vmatpush1.msra.mxu0 0.0
        %1930 = vmatprep.subr.mxu0 0.0
        %1931 = vmatpush1.msra.mxu0 0.0
        %1932 = vmatprep.subr.mxu0 0.0
        %1933 = vmatpush1.msra.mxu0 0.0
        %1934 = vmatprep.subr.mxu0 0.0
        %1935 = vmatpush1.msra.mxu0 0.0
        %1936 = vmatprep.subr.mxu0 0.0
        %1937 = vmatpush1.msra.mxu0 0.0
        %1938 = vmatprep.subr.mxu0 0.0
        %1939 = vmatpush1.msra.mxu0 0.0
        %1940 = vmatprep.subr.mxu0 0.0
        %1941 = vmatpush1.msra.mxu0 0.0
        %1942 = vmatprep.subr.mxu0 0.0
        %1943 = vmatpush1.msra.mxu0 0.0
        %1944 = vmatprep.subr.mxu0 0.0
        %1945 = vmatpush1.msra.mxu0 0.0
        %1946 = vmatprep.subr.mxu0 0.0
        %1947 = vmatpush1.msra.mxu0 0.0
        %1948 = vmatprep.subr.mxu0 0.0
        %1949 = vmatpush1.msra.mxu0 0.0
        %1950 = vmatprep.subr.mxu0 0.0
        %1951 = vmatpush1.msra.mxu0 0.0
        %1952 = vmatprep.subr.mxu0 0.0
        %1953 = vmatpush1.msra.mxu0 0.0
        %1954 = vmatprep.subr.mxu0 0.0
        %1955 = vmatpush1.msra.mxu0 0.0
        %1956 = vmatprep.subr.mxu0 0.0
        %1957 = vmatpush1.msra.mxu0 0.0
        %1958 = vmatprep.subr.mxu0 0.0
        %1959 = vmatpush1.msra.mxu0 0.0
        %1960 = vmatprep.subr.mxu0 0.0
        %1961 = vmatpush1.msra.mxu0 0.0
        %1962 = vmatprep.subr.mxu0 0.0
        %1963 = vmatpush1.msra.mxu0 0.0
        %1964 = vmatprep.subr.mxu0 0.0
        %1965 = vmatpush1.msra.mxu0 0.0
        %1966 = vmatprep.subr.mxu0 0.0
        %1967 = vmatpush1.msra.mxu0 0.0
        %1968 = vmatprep.subr.mxu0 0.0
        %1969 = vmatpush1.msra.mxu0 0.0
        %1970 = vmatprep.subr.mxu0 0.0
        %1971 = vmatpush1.msra.mxu0 0.0
        %1972 = vmatprep.mubr.f32.mxu0 0.0
        %1973 = vmatmul.mubr.f32.gmra.mrb[0].mxu0 %v1906
        %v1974 = vpop.f32.mrb[0].mxu0
        %v1975 = vadd.f32 %v1903, %v1974
        %v1976 = vpop.f32.mrb[0].mxu0
        %1977 = vdwg.mxu0
        %v1978 = vadd.f32 %v571, %v1975
        %v1979 = vld [vmem:[%s11] sm:$0x1]
        %v1980 = vld [vmem:[%s12] sm:$0x1]
        %v1981 = vsel %vm585, %v1978, 0.0
        %1982 = vadd.xlane.f32.xlu0 %v1981
        %v1983 = vpop.xlane.xlu0 %1982
        %v1984 = vrcp.pop 32.0
        %v1985 = vmul.f32 %v1983, %v1984
        %v1986 = vsub.f32 %v1978, %v1985
        %v1987 = vmul.f32 %v1986, %v1986
        %v1988 = vsel %vm585, %v1987, 0.0
        %1989 = vadd.xlane.f32.xlu0 %v1988
        %v1990 = vpop.xlane.xlu0 %1989
        %v1991 = vmul.f32 %v1990, %v1984
        %v1992 = vadd.f32 %v1991, 1e-05
        %v1993 = vrsqrt.pop %v1992
        %v1994 = vmul.f32 %v1986, %v1993
        %v1996 = vlaneseq
        %v1997 = vshrl.u32 %v1996, 7
        %v1998 = vsub.s32 0, %v1997
        %v1999 = vrot.slane %v1979, %v1998
        %v2001 = vmul.f32 %v1994, %v1999
        %v2003 = vlaneseq
        %v2004 = vshrl.u32 %v2003, 7
        %v2005 = vsub.s32 0, %v2004
        %v2006 = vrot.slane %v1980, %v2005
        %v2008 = vadd.f32 %v2001, %v2006
        %v2009 = vld [vmem:[%s7] sm:$0xff]
        %v2010 = vld [vmem:[%s7 + $0x8] sm:$0xff]
        %v2011 = vld [vmem:[%s7 + $0x10] sm:$0xff]
        %v2012 = vld [vmem:[%s7 + $0x18] sm:$0xff]
        %v2013 = vld [vmem:[%s8] sm:$0x1]
        %v2015 = vlaneseq
        %v2016 = vshrl.u32 %v2015, 7
        %v2017 = vsub.s32 0, %v2016
        %v2018 = vrot.slane %v2013, %v2017
        %v2021 = vsel %vm585, %v2008, 0
        %2023 = vmatprep.subr.mxu0 0.0
        %2024 = vmatpush1.msra.mxu0 %v2009
        %2025 = vmatprep.subr.mxu0 0.0
        %2026 = vmatpush1.msra.mxu0 %v2010
        %2027 = vmatprep.subr.mxu0 0.0
        %2028 = vmatpush1.msra.mxu0 %v2011
        %2029 = vmatprep.subr.mxu0 0.0
        %2030 = vmatpush1.msra.mxu0 %v2012
        %2031 = vmatprep.subr.mxu0 0.0
        %2032 = vmatpush1.msra.mxu0 0.0
        %2033 = vmatprep.subr.mxu0 0.0
        %2034 = vmatpush1.msra.mxu0 0.0
        %2035 = vmatprep.subr.mxu0 0.0
        %2036 = vmatpush1.msra.mxu0 0.0
        %2037 = vmatprep.subr.mxu0 0.0
        %2038 = vmatpush1.msra.mxu0 0.0
        %2039 = vmatprep.subr.mxu0 0.0
        %2040 = vmatpush1.msra.mxu0 0.0
        %2041 = vmatprep.subr.mxu0 0.0
        %2042 = vmatpush1.msra.mxu0 0.0
        %2043 = vmatprep.subr.mxu0 0.0
        %2044 = vmatpush1.msra.mxu0 0.0
        %2045 = vmatprep.subr.mxu0 0.0
        %2046 = vmatpush1.msra.mxu0 0.0
        %2047 = vmatprep.subr.mxu0 0.0
        %2048 = vmatpush1.msra.mxu0 0.0
        %2049 = vmatprep.subr.mxu0 0.0
        %2050 = vmatpush1.msra.mxu0 0.0
        %2051 = vmatprep.subr.mxu0 0.0
        %2052 = vmatpush1.msra.mxu0 0.0
        %2053 = vmatprep.subr.mxu0 0.0
        %2054 = vmatpush1.msra.mxu0 0.0
        %2055 = vmatprep.subr.mxu0 0.0
        %2056 = vmatpush1.msra.mxu0 0.0
        %2057 = vmatprep.subr.mxu0 0.0
        %2058 = vmatpush1.msra.mxu0 0.0
        %2059 = vmatprep.subr.mxu0 0.0
        %2060 = vmatpush1.msra.mxu0 0.0
        %2061 = vmatprep.subr.mxu0 0.0
        %2062 = vmatpush1.msra.mxu0 0.0
        %2063 = vmatprep.subr.mxu0 0.0
        %2064 = vmatpush1.msra.mxu0 0.0
        %2065 = vmatprep.subr.mxu0 0.0
        %2066 = vmatpush1.msra.mxu0 0.0
        %2067 = vmatprep.subr.mxu0 0.0
        %2068 = vmatpush1.msra.mxu0 0.0
        %2069 = vmatprep.subr.mxu0 0.0
        %2070 = vmatpush1.msra.mxu0 0.0
        %2071 = vmatprep.subr.mxu0 0.0
        %2072 = vmatpush1.msra.mxu0 0.0
        %2073 = vmatprep.subr.mxu0 0.0
        %2074 = vmatpush1.msra.mxu0 0.0
        %2075 = vmatprep.subr.mxu0 0.0
        %2076 = vmatpush1.msra.mxu0 0.0
        %2077 = vmatprep.subr.mxu0 0.0
        %2078 = vmatpush1.msra.mxu0 0.0
        %2079 = vmatprep.subr.mxu0 0.0
        %2080 = vmatpush1.msra.mxu0 0.0
        %2081 = vmatprep.subr.mxu0 0.0
        %2082 = vmatpush1.msra.mxu0 0.0
        %2083 = vmatprep.subr.mxu0 0.0
        %2084 = vmatpush1.msra.mxu0 0.0
        %2085 = vmatprep.subr.mxu0 0.0
        %2086 = vmatpush1.msra.mxu0 0.0
        %2087 = vmatprep.mubr.f32.mxu0 0.0
        %2088 = vmatmul.mubr.f32.gmra.mrb[0].mxu0 %v2021
        %v2089 = vpop.f32.mrb[0].mxu0
        %v2090 = vadd.f32 %v2018, %v2089
        %v2091 = vpop.f32.mrb[0].mxu0
        %2092 = vdwg.mxu0
        %v2093 = vmax.f32 %v2090, 0.0
        %v2094 = vld [vmem:[%s9] sm:$0xff]
        %v2095 = vld [vmem:[%s9 + $0x8] sm:$0xff]
        %v2096 = vld [vmem:[%s9 + $0x10] sm:$0xff]
        %v2097 = vld [vmem:[%s9 + $0x18] sm:$0xff]
        %v2098 = vld [vmem:[%s9 + $0x20] sm:$0xff]
        %v2099 = vld [vmem:[%s9 + $0x28] sm:$0xff]
        %v2100 = vld [vmem:[%s9 + $0x30] sm:$0xff]
        %v2101 = vld [vmem:[%s9 + $0x38] sm:$0xff]
        %v2102 = vld [vmem:[%s9 + $0x40] sm:$0xff]
        %v2103 = vld [vmem:[%s9 + $0x48] sm:$0xff]
        %v2104 = vld [vmem:[%s9 + $0x50] sm:$0xff]
        %v2105 = vld [vmem:[%s9 + $0x58] sm:$0xff]
        %v2106 = vld [vmem:[%s9 + $0x60] sm:$0xff]
        %v2107 = vld [vmem:[%s9 + $0x68] sm:$0xff]
        %v2108 = vld [vmem:[%s9 + $0x70] sm:$0xff]
        %v2109 = vld [vmem:[%s9 + $0x78] sm:$0xff]
        %v2110 = vld [vmem:[%s10] sm:$0x1]
        %v2112 = vlaneseq
        %v2113 = vshrl.u32 %v2112, 7
        %v2114 = vsub.s32 0, %v2113
        %v2115 = vrot.slane %v2110, %v2114
        %2117 = vmatprep.subr.mxu0 0.0
        %2118 = vmatpush1.msra.mxu0 %v2094
        %2119 = vmatprep.subr.mxu0 0.0
        %2120 = vmatpush1.msra.mxu0 %v2095
        %2121 = vmatprep.subr.mxu0 0.0
        %2122 = vmatpush1.msra.mxu0 %v2096
        %2123 = vmatprep.subr.mxu0 0.0
        %2124 = vmatpush1.msra.mxu0 %v2097
        %2125 = vmatprep.subr.mxu0 0.0
        %2126 = vmatpush1.msra.mxu0 %v2098
        %2127 = vmatprep.subr.mxu0 0.0
        %2128 = vmatpush1.msra.mxu0 %v2099
        %2129 = vmatprep.subr.mxu0 0.0
        %2130 = vmatpush1.msra.mxu0 %v2100
        %2131 = vmatprep.subr.mxu0 0.0
        %2132 = vmatpush1.msra.mxu0 %v2101
        %2133 = vmatprep.subr.mxu0 0.0
        %2134 = vmatpush1.msra.mxu0 %v2102
        %2135 = vmatprep.subr.mxu0 0.0
        %2136 = vmatpush1.msra.mxu0 %v2103
        %2137 = vmatprep.subr.mxu0 0.0
        %2138 = vmatpush1.msra.mxu0 %v2104
        %2139 = vmatprep.subr.mxu0 0.0
        %2140 = vmatpush1.msra.mxu0 %v2105
        %2141 = vmatprep.subr.mxu0 0.0
        %2142 = vmatpush1.msra.mxu0 %v2106
        %2143 = vmatprep.subr.mxu0 0.0
        %2144 = vmatpush1.msra.mxu0 %v2107
        %2145 = vmatprep.subr.mxu0 0.0
        %2146 = vmatpush1.msra.mxu0 %v2108
        %2147 = vmatprep.subr.mxu0 0.0
        %2148 = vmatpush1.msra.mxu0 %v2109
        %2149 = vmatprep.subr.mxu0 0.0
        %2150 = vmatpush1.msra.mxu0 0.0
        %2151 = vmatprep.subr.mxu0 0.0
        %2152 = vmatpush1.msra.mxu0 0.0
        %2153 = vmatprep.subr.mxu0 0.0
        %2154 = vmatpush1.msra.mxu0 0.0
        %2155 = vmatprep.subr.mxu0 0.0
        %2156 = vmatpush1.msra.mxu0 0.0
        %2157 = vmatprep.subr.mxu0 0.0
        %2158 = vmatpush1.msra.mxu0 0.0
        %2159 = vmatprep.subr.mxu0 0.0
        %2160 = vmatpush1.msra.mxu0 0.0
        %2161 = vmatprep.subr.mxu0 0.0
        %2162 = vmatpush1.msra.mxu0 0.0
        %2163 = vmatprep.subr.mxu0 0.0
        %2164 = vmatpush1.msra.mxu0 0.0
        %2165 = vmatprep.subr.mxu0 0.0
        %2166 = vmatpush1.msra.mxu0 0.0
        %2167 = vmatprep.subr.mxu0 0.0
        %2168 = vmatpush1.msra.mxu0 0.0
        %2169 = vmatprep.subr.mxu0 0.0
        %2170 = vmatpush1.msra.mxu0 0.0
        %2171 = vmatprep.subr.mxu0 0.0
        %2172 = vmatpush1.msra.mxu0 0.0
        %2173 = vmatprep.subr.mxu0 0.0
        %2174 = vmatpush1.msra.mxu0 0.0
        %2175 = vmatprep.subr.mxu0 0.0
        %2176 = vmatpush1.msra.mxu0 0.0
        %2177 = vmatprep.subr.mxu0 0.0
        %2178 = vmatpush1.msra.mxu0 0.0
        %2179 = vmatprep.subr.mxu0 0.0
        %2180 = vmatpush1.msra.mxu0 0.0
        %2181 = vmatprep.mubr.f32.mxu0 0.0
        %2182 = vmatmul.mubr.f32.gmra.mrb[0].mxu0 %v2093
        %v2183 = vpop.f32.mrb[0].mxu0
        %v2184 = vadd.f32 %v2115, %v2183
        %v2185 = vpop.f32.mrb[0].mxu0
        %2186 = vdwg.mxu0
        %v2187 = vadd.f32 %v2008, %v2184
        %v2188 = vld [vmem:[%s13] sm:$0x1]
        %v2189 = vld [vmem:[%s14] sm:$0x1]
        %v2190 = vsel %vm585, %v2187, 0.0
        %2191 = vadd.xlane.f32.xlu0 %v2190
        %v2192 = vpop.xlane.xlu0 %2191
        %v2193 = vmul.f32 %v2192, %v1984
        %v2194 = vsub.f32 %v2187, %v2193
        %v2195 = vmul.f32 %v2194, %v2194
        %v2196 = vsel %vm585, %v2195, 0.0
        %2197 = vadd.xlane.f32.xlu0 %v2196
        %v2198 = vpop.xlane.xlu0 %2197
        %v2199 = vmul.f32 %v2198, %v1984
        %v2200 = vadd.f32 %v2199, 1e-05
        %v2201 = vrsqrt.pop %v2200
        %v2202 = vmul.f32 %v2194, %v2201
        %v2204 = vlaneseq
        %v2205 = vshrl.u32 %v2204, 7
        %v2206 = vsub.s32 0, %v2205
        %v2207 = vrot.slane %v2188, %v2206
        %v2209 = vmul.f32 %v2202, %v2207
        %v2211 = vlaneseq
        %v2212 = vshrl.u32 %v2211, 7
        %v2213 = vsub.s32 0, %v2212
        %v2214 = vrot.slane %v2189, %v2213
        %v2216 = vadd.f32 %v2209, %v2214
        %2217 = vst.msk [vmem:[%s485] sm:$0xff] %vm585, %v2216
        %s2218 = sand.u32 %s357, 1
        %s2219 = scalar_lea.sflag [#allocation3], %s2218
        %s2220 = sand.u32 %s357, 1
        %s2221 = smul.addr %s2220, 8
        %s2222 = scalar_lea.vmem [#allocation2], %s2221
        // Predicated region
        $region81: #{tpu_custom_call.1} parent=79 // pred_check
          %p2223 = pneg %p367
        $region82: #{tpu_custom_call.1} parent=79 // pred_check_branch
          %2225 = sbr.rel (%p2223) target = $region84
        $region83: #{tpu_custom_call.1} parent=79 // pred_region
          %s2227 = ssub.s32 128, 128
          %2228 = vsyncadd %s2219, %s2227
          %s2229 = smul.addr %s29, 128
          %s2230 = scalar_lea.hbm %s15, %s2229
          %s2232 = sshll.u32 %s2222, 4
          %s2233 = int_to_ptr.vmem [resolvable:$true] %s2232
          %2235 = dma.vmem_to_hbm [thread:$0]  %s2233, 128, %s2230, %s2219
        $region84: #{tpu_custom_call.1} parent=79 // pred_fallthru
          _
      $region80: #{tpu_custom_call.1} parent=5 // pred_fallthru
        _
      %p2236 = scmp.le.s32.totalorder 2, %s24
      // Predicated region
      $region85: #{tpu_custom_call.1} parent=5 // pred_check
        %p2237 = pneg %p2236
      $region86: #{tpu_custom_call.1} parent=5 // pred_check_branch
        %2239 = sbr.rel (%p2237) target = $region88
      $region87: #{tpu_custom_call.1} parent=5 // pred_region
        %s2240 = ssub.s32 %s24, 2
        // Predicated region
        $region89: #{tpu_custom_call.1} parent=87 // pred_check
          %p2241 = pneg %p373
        $region90: #{tpu_custom_call.1} parent=87 // pred_check_branch
          %2243 = sbr.rel (%p2241) target = $region92
        $region91: #{tpu_custom_call.1} parent=87 // pred_region
          %s2244 = sand.u32 %s358, 1
          %s2245 = scalar_lea.sflag [#allocation3], %s2244
          %s2246 = sand.u32 %s358, 1
          %s2247 = smul.addr %s2246, 8
          %s2248 = scalar_lea.vmem [#allocation2], %s2247
          %2249 = dma.done %s2245, 128
        $region92: #{tpu_custom_call.1} parent=87 // pred_fallthru
          _
      $region88: #{tpu_custom_call.1} parent=5 // pred_fallthru
        _
    $region6: #{tpu_custom_call.1} parent=1 // loop_footer
      %s28 = sadd.s32 1, %s24
    $region7: #{tpu_custom_call.1} parent=1 // loop_footer_branch
      %23 = sbr.rel target = $region3
    $region8: #{tpu_custom_call.1} parent=1 // loop_exit
      _
    %2250 = vsyncpa [#allocation3], 1
    %s2251 = scalar_lea.sflag [#allocation3], 1
    %2252 = vsyncpa %s2251, 1

</llo_original>
